<compile_context>
chip_gen: v7x
topology: tpu7x:2x2x1
jax: 0.10.0
libtpu: 0.0.40
codegen_flags: <defaults>
</compile_context>

<pallas_src>
import numpy as np
import jax
import jax.numpy as jnp
from jax.experimental import pallas as pl
from jax.experimental.pallas import tpu as pltpu

BN_EPS = 1e-5


# ----------------------------- host-side static matrices -----------------------------

def adaptive_pool_matrix(in_size: int, out_size: int) -> np.ndarray:
    """P[i, h] such that pooled[i] = sum_h P[i, h] * x[h] (PyTorch AdaptiveAvgPool)."""
    P = np.zeros((out_size, in_size), dtype=np.float32)
    for i in range(out_size):
        start = (i * in_size) // out_size
        end = -(-((i + 1) * in_size) // out_size)  # ceil
        P[i, start:end] = 1.0 / (end - start)
    return P


def bilinear_upsample_matrix(out_size: int, in_size: int) -> np.ndarray:
    """U[h, i] such that out[h] = sum_i U[h, i] * in[i], align_corners=True."""
    U = np.zeros((out_size, in_size), dtype=np.float32)
    if in_size == 1:
        U[:, 0] = 1.0
        return U
    for h in range(out_size):
        src = h * (in_size - 1) / (out_size - 1) if out_size > 1 else 0.0
        i0 = int(np.floor(src))
        i1 = min(i0 + 1, in_size - 1)
        frac = src - i0
        U[h, i0] += 1.0 - frac
        U[h, i1] += frac
    return U


# ----------------------------- small helpers -----------------------------

def _round_up(a: int, b: int) -> int:
    return ((a + b - 1) // b) * b


def _pick_row_tile(total: int, want: int) -> int:
    """Largest divisor of `total` that is a multiple of 8 and <= want (else total)."""
    want = min(want, total)
    for t in range(want, 7, -1):
        if total % t == 0 and t % 8 == 0:
            return t
    return total


def _vmem_limit(nbytes: int) -> int:
    """Scoped-VMEM request: actual working set + headroom, floored at 32 MiB and
    capped below v7x's 64 MiB physical VMEM."""
    return int(min(max(nbytes + (4 << 20), 32 << 20), 56 << 20))


# ----------------------------- kernel A: fused adaptive avg-pool -----------------------------

def pool_kernel(x_ref, pt_ref, pooled_ref):
    # x_ref:      (row_tile, hw_tile)  input rows (flattened N*C), spatial on lanes (f32)
    # pt_ref:     (hw_tile, B_pad)     fused adaptive-avg-pool matrix tile (bf16)
    # pooled_ref: (row_tile, B_pad)    f32 accumulator, resident across the hw axis
    @pl.when(pl.program_id(1) == 0)
    def _init():
        pooled_ref[...] = jnp.zeros_like(pooled_ref)

    # bf16 MXU operands, f32 accumulation.
    pooled_ref[...] += jnp.dot(x_ref[...].astype(jnp.bfloat16), pt_ref[...],
                               preferred_element_type=jnp.float32)


# ----------------------------- kernel B: 1x1 conv + masked BN + ReLU -----------------------------

def conv_bn_relu_kernel(pooled_ref, w_ref, gamma_ref, beta_ref, mask_ref,
                        invc_ref, a_ref):
    # pooled_ref: (N*C, B_pad)    f32 pooled bins (pad columns are exactly 0)
    # w_ref:      (nbR, C)        stacked 1x1 conv weights (bf16)
    # gamma/beta: (nbR, 1)        stacked BN affine parameters (f32)
    # mask_ref:   (nbR, B_pad)    1.0 where a column belongs to the row's branch
    # invc_ref:   (nbR, 1)        1 / (N * bin^2) per output channel
    # a_ref:      (N, nbR, B_pad) bf16 output (post BN+ReLU, masked)
    n_batch = a_ref.shape[0]
    c_in = w_ref.shape[1]
    w = w_ref[...]
    mask = mask_ref[...]
    invc = invc_ref[...]

    # 1x1 conv for every branch at once: one (nbR, C) @ (C, B_pad) MXU matmul per
    # sample (bf16 operands, f32 accumulation).  Per-branch statistics are
    # accumulated into small (nbR, 1) vectors instead of materializing full
    # (N, nbR, B_pad) masked temporaries.
    zs = []
    s1 = jnp.zeros((w.shape[0], 1), jnp.float32)
    for n in range(n_batch):
        p_n = pooled_ref[n * c_in:(n + 1) * c_in, :].astype(jnp.bfloat16)
        z_n = jnp.dot(w, p_n, preferred_element_type=jnp.float32)     # (nbR, B_pad)
        zs.append(z_n)
        s1 = s1 + jnp.sum(z_n * mask, axis=1, keepdims=True)
    mean = s1 * invc                                                   # (nbR, 1)

    s2 = jnp.zeros_like(s1)
    for z_n in zs:
        d = (z_n - mean) * mask
        s2 = s2 + jnp.sum(d * d, axis=1, keepdims=True)
    var = s2 * invc                                                    # biased variance

    # Masked training-mode BatchNorm + ReLU; invalid / other-branch columns are
    # forced to 0 so kernel C's fused upsample only picks up each branch's bins.
    scale = gamma_ref[...] * jax.lax.rsqrt(var + BN_EPS)
    shift = beta_ref[...] - mean * scale
    for n in range(n_batch):
        a_n = jnp.maximum(zs[n] * scale + shift, 0.0) * mask
        a_ref[n, :, :] = a_n.astype(a_ref.dtype)


# ----------------------------- kernel C: bilinear upsample + concat -----------------------------

def upsample_concat_kernel(x_ref, a_ref, up_ref, o_ref):
    # x_ref:  (N, C, hw_tile)        original features (copied: fused concat)
    # a_ref:  (N, nbR, B_pad)        bf16 BN+ReLU'd pooled activations (all branches)
    # up_ref: (B_pad, hw_tile)       fused bilinear upsample matrix tile (bf16)
    # o_ref:  (N, C + nbR, hw_tile)  final PPM output tile
    n_batch, c_in = x_ref.shape[0], x_ref.shape[1]
    nbr = a_ref.shape[1]
    o_ref[:, :c_in, :] = x_ref[...].astype(o_ref.dtype)
    # One big (N*nbR, B_pad) @ (B_pad, hw_tile) matmul: the upsample RHS tile is
    # pushed to the MXU once and reused across the whole batch.
    a2 = a_ref[...].reshape(n_batch * nbr, a_ref.shape[2])
    y = jnp.dot(a2, up_ref[...], preferred_element_type=jnp.float32)
    o_ref[:, c_in:, :] = y.reshape(n_batch, nbr, y.shape[1]).astype(o_ref.dtype)


# ----------------------------- parameters / fused operands -----------------------------

def init_ppm_params(key, in_dim, reduction_dim, bins, H, W):
    HW = H * W
    nb = len(bins)
    R = reduction_dim
    nbR = nb * R

    branches = []
    for b in bins:
        key, kw, kg, kb = jax.random.split(key, 4)
        w = jax.random.normal(kw, (R, in_dim), jnp.float32) / np.sqrt(in_dim)
        gamma = 1.0 + 0.1 * jax.random.normal(kg, (R,), jnp.float32)
        beta = 0.1 * jax.random.normal(kb, (R,), jnp.float32)
        P_h = adaptive_pool_matrix(H, b)
        P_w = adaptive_pool_matrix(W, b)
        PT = np.kron(P_h, P_w).T.astype(np.float32)          # (HW, b*b)
        U_h = bilinear_upsample_matrix(H, b)
        U_w = bilinear_upsample_matrix(W, b)
        UP = np.kron(U_h, U_w).T.astype(np.float32)          # (b*b, HW)
        branches.append(dict(w=w, gamma=gamma, beta=beta,
                             pt=jnp.asarray(PT), up=jnp.asarray(UP), b2=b * b))

    # Fused, lane-dense operands: all branch bin columns packed together and
    # zero-padded to a multiple of 128 lanes.
    B_total = int(sum(br["b2"] for br in branches))
    B_pad = ((B_total + 127) // 128) * 128

    pt_all = np.zeros((HW, B_pad), np.float32)
    up_all = np.zeros((B_pad, HW), np.float32)
    mask = np.zeros((nbR, B_pad), np.float32)
    cols_per_row = np.zeros((nbR, 1), np.float32)
    col = 0
    for k, br in enumerate(branches):
        b2 = br["b2"]
        pt_all[:, col:col + b2] = np.asarray(br["pt"])
        up_all[col:col + b2, :] = np.asarray(br["up"])
        mask[k * R:(k + 1) * R, col:col + b2] = 1.0
        cols_per_row[k * R:(k + 1) * R, 0] = float(b2)
        col += b2

    w_all = jnp.concatenate([br["w"] for br in branches], axis=0)           # (nbR, C)
    gamma_all = jnp.concatenate([br["gamma"] for br in branches])[:, None]  # (nbR, 1)
    beta_all = jnp.concatenate([br["beta"] for br in branches])[:, None]    # (nbR, 1)

    return dict(branches=branches, nb=nb, R=R, B_pad=B_pad,
                # matmul operands stored in bf16 (MXU-native; f32 accumulation in-kernel)
                pt_all=jnp.asarray(pt_all, dtype=jnp.bfloat16),
                up_all=jnp.asarray(up_all, dtype=jnp.bfloat16),
                w_all=w_all.astype(jnp.bfloat16),
                mask=jnp.asarray(mask), cols_per_row=jnp.asarray(cols_per_row),
                gamma_all=gamma_all, beta_all=beta_all)


# ----------------------------- forward -----------------------------

def ppm_forward(x, params, hw_tile=256, row_tile=256):
    """x: (N, C, H, W) float32 -> (N, C + nb*R, H, W) float32."""
    N, C, H, W = x.shape
    HW = H * W
    nbR = params["nb"] * params["R"]
    B_pad = params["B_pad"]

    # Lane-dense hw tiling: zero-pad HW up to a multiple of hw_tile (itself a
    # multiple of 128) instead of collapsing to one giant un-pipelined tile.
    hw_tile = max(128, (hw_tile // 128) * 128)
    hw_tile = min(hw_tile, _round_up(HW, 128))
    HW_pad = _round_up(HW, hw_tile)
    n_hw = HW_pad // hw_tile
    row_tile = _pick_row_tile(N * C, row_tile)
    n_rows = (N * C) // row_tile

    x2 = x.reshape(N * C, HW)   # pooling layout: big matmuls over HW tiles
    x3 = x.reshape(N, C, HW)    # concat layout
    pt = params["pt_all"]
    up = params["up_all"]
    if HW_pad != HW:
        # Zero rows of PT contribute nothing to the pooled sums; padded output
        # columns are sliced off below.
        # TODO(synk): fold the spatial zero-padding into the kernels (masked
        # stores / BoundedSlice) to avoid the extra host-side pad copies of x.
        pad = HW_pad - HW
        x2 = jnp.pad(x2, ((0, 0), (0, pad)))
        x3 = jnp.pad(x3, ((0, 0), (0, 0), (0, pad)))
        pt = jnp.pad(pt, ((0, pad), (0, 0)))
        up = jnp.pad(up, ((0, 0), (0, pad)))

    inv_count = (1.0 / (N * params["cols_per_row"])).astype(jnp.float32)

    # ---- kernel A: fused adaptive avg-pool (all branches), parallel rows x reduction hw ----
    vmem_a = _vmem_limit(2 * (row_tile * hw_tile * 4 + hw_tile * B_pad * 2
                              + row_tile * B_pad * 4))
    pooled = pl.pallas_call(
        pool_kernel,
        out_shape=jax.ShapeDtypeStruct((N * C, B_pad), jnp.float32),
        grid_spec=pltpu.PrefetchScalarGridSpec(
            num_scalar_prefetch=0,
            grid=(n_rows, n_hw),
            in_specs=[
                pl.BlockSpec((row_tile, hw_tile), lambda i, j: (i, j)),
                pl.BlockSpec((hw_tile, B_pad), lambda i, j: (j, 0)),
            ],
            out_specs=pl.BlockSpec((row_tile, B_pad), lambda i, j: (i, 0)),
        ),
        compiler_params=pltpu.CompilerParams(
            dimension_semantics=("parallel", "arbitrary"),
            vmem_limit_bytes=vmem_a),
        cost_estimate=pl.CostEstimate(
            flops=int(2 * N * C * HW_pad * B_pad), transcendentals=0,
            bytes_accessed=int(4 * N * C * HW_pad + 2 * HW_pad * B_pad
                               + 4 * N * C * B_pad)),
    )(x2, pt)

    # ---- kernel B: 1x1 conv + masked training-mode BN + ReLU (runs once, no grid) ----
    vmem_b = _vmem_limit(N * C * B_pad * 4 + nbR * C * 2 + nbR * (2 * B_pad + 8) * 4
                         + N * nbR * B_pad * (4 + 2))
    a_all = pl.pallas_call(
        conv_bn_relu_kernel,
        out_shape=jax.ShapeDtypeStruct((N, nbR, B_pad), jnp.bfloat16),
        compiler_params=pltpu.CompilerParams(vmem_limit_bytes=vmem_b),
        cost_estimate=pl.CostEstimate(
            flops=int(2 * N * nbR * C * B_pad + 8 * N * nbR * B_pad),
            transcendentals=int(nbR),
            bytes_accessed=int(4 * N * C * B_pad + 2 * nbR * C
                               + 2 * N * nbR * B_pad)),
    )(pooled, params["w_all"], params["gamma_all"], params["beta_all"],
      params["mask"], inv_count)

    # ---- kernel C: fused bilinear upsample (all branches) + channel concat ----
    vmem_c = _vmem_limit(2 * (N * C * hw_tile * 4 + N * nbR * B_pad * 2
                              + B_pad * hw_tile * 2 + N * (C + nbR) * hw_tile * 4))
    out = pl.pallas_call(
        upsample_concat_kernel,
        out_shape=jax.ShapeDtypeStruct((N, C + nbR, HW_pad), x.dtype),
        grid_spec=pltpu.PrefetchScalarGridSpec(
            num_scalar_prefetch=0,
            grid=(n_hw,),
            in_specs=[
                pl.BlockSpec((N, C, hw_tile), lambda j: (0, 0, j)),
                pl.BlockSpec((N, nbR, B_pad), lambda j: (0, 0, 0)),
                pl.BlockSpec((B_pad, hw_tile), lambda j: (0, j)),
            ],
            out_specs=pl.BlockSpec((N, C + nbR, hw_tile), lambda j: (0, 0, j)),
        ),
        compiler_params=pltpu.CompilerParams(
            dimension_semantics=("parallel",),
            vmem_limit_bytes=vmem_c),
        cost_estimate=pl.CostEstimate(
            flops=int(2 * N * nbR * B_pad * HW_pad), transcendentals=0,
            bytes_accessed=int(4 * N * C * HW_pad + 2 * N * nbR * B_pad
                               + 2 * B_pad * HW_pad + 4 * N * (C + nbR) * HW_pad)),
    )(x3, a_all, up)

    if HW_pad != HW:
        out = out[:, :, :HW]
    return out.reshape(N, C + nbR, H, W)


# ----------------------------- pure-JAX reference (for sanity check) -----------------------------

def _q(a):
    """bf16 round-trip: mirrors the kernels' MXU-operand precision policy (bf16
    matmul operands, f32 accumulation) so the check isolates structural
    correctness.  vs. a full-f32 reference the outputs differ by O(1e-2) only
    through BatchNorm's variance normalization of bf16-rounded conv outputs."""
    return a.astype(jnp.bfloat16).astype(jnp.float32)


def ppm_reference(x, params):
    N, C, H, W = x.shape
    xf = _q(x.reshape(N, C, H * W))
    outs = [x]
    for br in params["branches"]:
        pooled = jnp.einsum("nch,hb->ncb", xf, _q(br["pt"]))
        z = jnp.einsum("rc,ncb->nrb", _q(br["w"]), _q(pooled))
        mean = z.mean(axis=(0, 2), keepdims=True)
        var = ((z - mean) ** 2).mean(axis=(0, 2), keepdims=True)
        a = ((z - mean) * jax.lax.rsqrt(var + BN_EPS) * br["gamma"][None, :, None]
             + br["beta"][None, :, None])
        a = jnp.maximum(a, 0.0)
        o = jnp.einsum("nrb,bh->nrh", _q(a), _q(br["up"])).reshape(N, -1, H, W)
        outs.append(o)
    return jnp.concatenate(outs, axis=1)


# ----------------------------- main -----------------------------

if __name__ == "__main__":
    # H = W = 12 is deliberately NOT a multiple of 128 so the HW zero-padding
    # path (144 -> 256) and the 2-step reduction grid are both exercised.
    N, C, H, W = 2, 8, 12, 12
    reduction_dim = 8
    bins = (1, 2, 3, 6)

    key = jax.random.PRNGKey(0)
    kx, kp = jax.random.split(key)
    x = jax.random.normal(kx, (N, C, H, W), jnp.float32)

    params = init_ppm_params(kp, C, reduction_dim, bins, H, W)

    # hw_tile=128 keeps a multi-step reduction at this tiny demo size;
    # production spatial sizes should use the 256(-512) default.
    fwd = jax.jit(lambda xx: ppm_forward(xx, params, hw_tile=128))
    out = jax.block_until_ready(fwd(x))

    expected_channels = C + len(bins) * reduction_dim
    assert out.shape == (N, expected_channels, H, W), out.shape

    ref = jax.block_until_ready(ppm_reference(x, params))
    np.testing.assert_allclose(np.asarray(out), np.asarray(ref), rtol=2e-2, atol=2e-2)

    # TODO(synk): BatchNorm running-statistics updates (training-time side effect)
    # are intentionally not modeled.
    print("KERNEL_OK")
</pallas_src>

<mosaic_0001>
module attributes {stable_mosaic.version = 11 : i64} {
  func.func @conv_bn_relu_kernel(%arg0: memref<16x128xf32, #tpu.memory_space<vmem>>, %arg1: memref<32x8xbf16, #tpu.memory_space<vmem>>, %arg2: memref<32x1xf32, #tpu.memory_space<vmem>>, %arg3: memref<32x1xf32, #tpu.memory_space<vmem>>, %arg4: memref<32x128xf32, #tpu.memory_space<vmem>>, %arg5: memref<32x1xf32, #tpu.memory_space<vmem>>, %arg6: memref<2x32x128xbf16, #tpu.memory_space<vmem>>) attributes {dimension_semantics = [], scalar_prefetch = 0 : i64, scratch_operands = 0 : i64, tpu.core_type = #tpu.core_type<tc>} {
    %c0 = arith.constant 0 : index
    %c0_0 = arith.constant 0 : index
    %0 = vector.load %arg1[%c0, %c0_0] : memref<32x8xbf16, #tpu.memory_space<vmem>>, vector<32x8xbf16>
    %c0_1 = arith.constant 0 : index
    %c0_2 = arith.constant 0 : index
    %1 = vector.load %arg4[%c0_1, %c0_2] : memref<32x128xf32, #tpu.memory_space<vmem>>, vector<32x128xf32>
    %c0_3 = arith.constant 0 : index
    %c0_4 = arith.constant 0 : index
    %2 = vector.load %arg5[%c0_3, %c0_4] : memref<32x1xf32, #tpu.memory_space<vmem>>, vector<32x1xf32>
    %cst = arith.constant 0.000000e+00 : f32
    %3 = vector.broadcast %cst : f32 to vector<32x1xf32>
    %c0_5 = arith.constant 0 : index
    %c0_6 = arith.constant 0 : index
    %4 = vector.load %arg0[%c0_5, %c0_6] : memref<16x128xf32, #tpu.memory_space<vmem>>, vector<8x128xf32>
    %5 = arith.truncf %4 : vector<8x128xf32> to vector<8x128xbf16>
    %cst_7 = arith.constant dense<0.000000e+00> : vector<32x128xf32>
    %6 = tpu.matmul %0, %5, %cst_7 {dimension_numbers = #tpu.dot_dimension_numbers<[1], [0], [0], [1], [0, 0, 1, 1], [], []>} : vector<32x8xbf16>, vector<8x128xbf16>, vector<32x128xf32> -> vector<32x128xf32>
    %7 = arith.mulf %6, %1 : vector<32x128xf32>
    %cst_8 = arith.constant dense<0.000000e+00> : vector<32xf32>
    %8 = vector.multi_reduction <add>, %7, %cst_8 [1] : vector<32x128xf32> to vector<32xf32>
    %9 = vector.shape_cast %8 : vector<32xf32> to vector<32x1xf32>
    %10 = arith.addf %3, %9 : vector<32x1xf32>
    %c8 = arith.constant 8 : index
    %c0_9 = arith.constant 0 : index
    %11 = vector.load %arg0[%c8, %c0_9] : memref<16x128xf32, #tpu.memory_space<vmem>>, vector<8x128xf32>
    %12 = arith.truncf %11 : vector<8x128xf32> to vector<8x128xbf16>
    %cst_10 = arith.constant dense<0.000000e+00> : vector<32x128xf32>
    %13 = tpu.matmul %0, %12, %cst_10 {dimension_numbers = #tpu.dot_dimension_numbers<[1], [0], [0], [1], [0, 0, 1, 1], [], []>} : vector<32x8xbf16>, vector<8x128xbf16>, vector<32x128xf32> -> vector<32x128xf32>
    %14 = arith.mulf %13, %1 : vector<32x128xf32>
    %cst_11 = arith.constant dense<0.000000e+00> : vector<32xf32>
    %15 = vector.multi_reduction <add>, %14, %cst_11 [1] : vector<32x128xf32> to vector<32xf32>
    %16 = vector.shape_cast %15 : vector<32xf32> to vector<32x1xf32>
    %17 = arith.addf %10, %16 : vector<32x1xf32>
    %18 = arith.mulf %17, %2 : vector<32x1xf32>
    %cst_12 = arith.constant 0.000000e+00 : f32
    %19 = vector.broadcast %cst_12 : f32 to vector<32x1xf32>
    %20 = vector.broadcast %18 : vector<32x1xf32> to vector<32x128xf32>
    %21 = arith.subf %6, %20 : vector<32x128xf32>
    %22 = arith.mulf %21, %1 : vector<32x128xf32>
    %23 = arith.mulf %22, %22 : vector<32x128xf32>
    %cst_13 = arith.constant dense<0.000000e+00> : vector<32xf32>
    %24 = vector.multi_reduction <add>, %23, %cst_13 [1] : vector<32x128xf32> to vector<32xf32>
    %25 = vector.shape_cast %24 : vector<32xf32> to vector<32x1xf32>
    %26 = arith.addf %19, %25 : vector<32x1xf32>
    %27 = vector.broadcast %18 : vector<32x1xf32> to vector<32x128xf32>
    %28 = arith.subf %13, %27 : vector<32x128xf32>
    %29 = arith.mulf %28, %1 : vector<32x128xf32>
    %30 = arith.mulf %29, %29 : vector<32x128xf32>
    %cst_14 = arith.constant dense<0.000000e+00> : vector<32xf32>
    %31 = vector.multi_reduction <add>, %30, %cst_14 [1] : vector<32x128xf32> to vector<32xf32>
    %32 = vector.shape_cast %31 : vector<32xf32> to vector<32x1xf32>
    %33 = arith.addf %26, %32 : vector<32x1xf32>
    %34 = arith.mulf %33, %2 : vector<32x1xf32>
    %c0_15 = arith.constant 0 : index
    %c0_16 = arith.constant 0 : index
    %35 = vector.load %arg2[%c0_15, %c0_16] : memref<32x1xf32, #tpu.memory_space<vmem>>, vector<32x1xf32>
    %cst_17 = arith.constant 9.99999974E-6 : f32
    %36 = vector.broadcast %cst_17 : f32 to vector<32x1xf32>
    %37 = arith.addf %34, %36 : vector<32x1xf32>
    %38 = math.rsqrt %37 : vector<32x1xf32>
    %39 = arith.mulf %35, %38 : vector<32x1xf32>
    %c0_18 = arith.constant 0 : index
    %c0_19 = arith.constant 0 : index
    %40 = vector.load %arg3[%c0_18, %c0_19] : memref<32x1xf32, #tpu.memory_space<vmem>>, vector<32x1xf32>
    %41 = arith.mulf %18, %39 : vector<32x1xf32>
    %42 = arith.subf %40, %41 : vector<32x1xf32>
    %43 = vector.broadcast %39 : vector<32x1xf32> to vector<32x128xf32>
    %44 = arith.mulf %6, %43 : vector<32x128xf32>
    %45 = vector.broadcast %42 : vector<32x1xf32> to vector<32x128xf32>
    %46 = arith.addf %44, %45 : vector<32x128xf32>
    %cst_20 = arith.constant 0.000000e+00 : f32
    %47 = vector.broadcast %cst_20 : f32 to vector<32x128xf32>
    %48 = arith.maximumf %46, %47 : vector<32x128xf32>
    %49 = arith.mulf %48, %1 : vector<32x128xf32>
    %50 = arith.truncf %49 : vector<32x128xf32> to vector<32x128xbf16>
    %c0_21 = arith.constant 0 : index
    %c0_22 = arith.constant 0 : index
    %c0_23 = arith.constant 0 : index
    %51 = vector.load %arg6[%c0_21, %c0_22, %c0_23] : memref<2x32x128xbf16, #tpu.memory_space<vmem>>, vector<1x32x128xbf16>
    %52 = vector.shape_cast %51 : vector<1x32x128xbf16> to vector<32x128xbf16>
    %53 = vector.shape_cast %50 : vector<32x128xbf16> to vector<1x32x128xbf16>
    tpu.vector_store %arg6[%c0_21, %c0_22, %c0_23], %53 {strides = array<i32>} : memref<2x32x128xbf16, #tpu.memory_space<vmem>>, vector<1x32x128xbf16>,
    %54 = vector.broadcast %39 : vector<32x1xf32> to vector<32x128xf32>
    %55 = arith.mulf %13, %54 : vector<32x128xf32>
    %56 = vector.broadcast %42 : vector<32x1xf32> to vector<32x128xf32>
    %57 = arith.addf %55, %56 : vector<32x128xf32>
    %cst_24 = arith.constant 0.000000e+00 : f32
    %58 = vector.broadcast %cst_24 : f32 to vector<32x128xf32>
    %59 = arith.maximumf %57, %58 : vector<32x128xf32>
    %60 = arith.mulf %59, %1 : vector<32x128xf32>
    %61 = arith.truncf %60 : vector<32x128xf32> to vector<32x128xbf16>
    %c1 = arith.constant 1 : index
    %c0_25 = arith.constant 0 : index
    %c0_26 = arith.constant 0 : index
    %62 = vector.load %arg6[%c1, %c0_25, %c0_26] : memref<2x32x128xbf16, #tpu.memory_space<vmem>>, vector<1x32x128xbf16>
    %63 = vector.shape_cast %62 : vector<1x32x128xbf16> to vector<32x128xbf16>
    %64 = vector.shape_cast %61 : vector<32x128xbf16> to vector<1x32x128xbf16>
    tpu.vector_store %arg6[%c1, %c0_25, %c0_26], %64 {strides = array<i32>} : memref<2x32x128xbf16, #tpu.memory_space<vmem>>, vector<1x32x128xbf16>,
    return
  }
}

module attributes {stable_mosaic.version = 11 : i64} {
  func.func @pool_kernel(%arg0: i32, %arg1: i32, %arg2: memref<16x128xf32, #tpu.memory_space<vmem>>, %arg3: memref<128x128xbf16, #tpu.memory_space<vmem>>, %arg4: memref<16x128xf32, #tpu.memory_space<vmem>>) attributes {dimension_semantics = [#tpu.dimension_semantics<parallel>, #tpu.dimension_semantics<arbitrary>], iteration_bounds = array<i64: 1, 2>, scalar_prefetch = 0 : i64, scratch_operands = 0 : i64, tpu.core_type = #tpu.core_type<tc>, window_params = [{transform_indices = @transform_0, window_bounds = array<i64: 16, 128>}, {transform_indices = @transform_1, window_bounds = array<i64: 128, 128>}, {transform_indices = @transform_2, window_bounds = array<i64: 16, 128>}]} {
    %c0_i32 = arith.constant 0 : i32
    %0 = arith.cmpi eq, %arg1, %c0_i32 : i32
    %1 = arith.extui %0 : i1 to i32
    %c0_i32_0 = arith.constant 0 : i32
    %2 = arith.cmpi ne, %1, %c0_i32_0 : i32
    scf.if %2 {
      %cst_8 = arith.constant 0.000000e+00 : f32
      %10 = vector.broadcast %cst_8 : f32 to vector<16x128xf32>
      %c0_9 = arith.constant 0 : index
      %c0_10 = arith.constant 0 : index
      %11 = vector.load %arg4[%c0_9, %c0_10] : memref<16x128xf32, #tpu.memory_space<vmem>>, vector<16x128xf32>
      tpu.vector_store %arg4[%c0_9, %c0_10], %10 {strides = array<i32>} : memref<16x128xf32, #tpu.memory_space<vmem>>, vector<16x128xf32>,
    } else {
    }
    %c0 = arith.constant 0 : index
    %c0_1 = arith.constant 0 : index
    %3 = vector.load %arg4[%c0, %c0_1] : memref<16x128xf32, #tpu.memory_space<vmem>>, vector<16x128xf32>
    %c0_2 = arith.constant 0 : index
    %c0_3 = arith.constant 0 : index
    %4 = vector.load %arg2[%c0_2, %c0_3] : memref<16x128xf32, #tpu.memory_space<vmem>>, vector<16x128xf32>
    %5 = arith.truncf %4 : vector<16x128xf32> to vector<16x128xbf16>
    %c0_4 = arith.constant 0 : index
    %c0_5 = arith.constant 0 : index
    %6 = vector.load %arg3[%c0_4, %c0_5] : memref<128x128xbf16, #tpu.memory_space<vmem>>, vector<128x128xbf16>
    %cst = arith.constant dense<0.000000e+00> : vector<16x128xf32>
    %7 = tpu.matmul %5, %6, %cst {dimension_numbers = #tpu.dot_dimension_numbers<[1], [0], [0], [1], [0, 0, 1, 1], [], []>} : vector<16x128xbf16>, vector<128x128xbf16>, vector<16x128xf32> -> vector<16x128xf32>
    %8 = arith.addf %3, %7 : vector<16x128xf32>
    %c0_6 = arith.constant 0 : index
    %c0_7 = arith.constant 0 : index
    %9 = vector.load %arg4[%c0_6, %c0_7] : memref<16x128xf32, #tpu.memory_space<vmem>>, vector<16x128xf32>
    tpu.vector_store %arg4[%c0_6, %c0_7], %8 {strides = array<i32>} : memref<16x128xf32, #tpu.memory_space<vmem>>, vector<16x128xf32>,
    return
  }
  func.func @transform_0(%arg0: i32, %arg1: i32) -> (i32, i32) {
    %c0_i32 = arith.constant 0 : i32
    return %arg0, %arg1 : i32, i32
  }
  func.func @transform_1(%arg0: i32, %arg1: i32) -> (i32, i32) {
    %c0_i32 = arith.constant 0 : i32
    %c0_i32_0 = arith.constant 0 : i32
    return %arg1, %c0_i32 : i32, i32
  }
  func.func @transform_2(%arg0: i32, %arg1: i32) -> (i32, i32) {
    %c0_i32 = arith.constant 0 : i32
    %c0_i32_0 = arith.constant 0 : i32
    return %arg0, %c0_i32 : i32, i32
  }
}

module attributes {stable_mosaic.version = 11 : i64} {
  func.func @upsample_concat_kernel(%arg0: i32, %arg1: memref<2x8x128xf32, #tpu.memory_space<vmem>>, %arg2: memref<2x32x128xbf16, #tpu.memory_space<vmem>>, %arg3: memref<128x128xbf16, #tpu.memory_space<vmem>>, %arg4: memref<2x40x128xf32, #tpu.memory_space<vmem>>) attributes {dimension_semantics = [#tpu.dimension_semantics<parallel>], iteration_bounds = array<i64: 2>, scalar_prefetch = 0 : i64, scratch_operands = 0 : i64, tpu.core_type = #tpu.core_type<tc>, window_params = [{transform_indices = @transform_0, window_bounds = array<i64: 2, 8, 128>}, {pipeline_mode = #tpu.pipeline_mode<synchronous>, transform_indices = @transform_1, window_bounds = array<i64: 2, 32, 128>}, {transform_indices = @transform_2, window_bounds = array<i64: 128, 128>}, {transform_indices = @transform_3, window_bounds = array<i64: 2, 40, 128>}]} {
    %c0 = arith.constant 0 : index
    %c0_0 = arith.constant 0 : index
    %c0_1 = arith.constant 0 : index
    %0 = vector.load %arg1[%c0, %c0_0, %c0_1] : memref<2x8x128xf32, #tpu.memory_space<vmem>>, vector<2x8x128xf32>
    %c0_2 = arith.constant 0 : index
    %c0_3 = arith.constant 0 : index
    %c0_4 = arith.constant 0 : index
    %1 = vector.load %arg4[%c0_2, %c0_3, %c0_4] : memref<2x40x128xf32, #tpu.memory_space<vmem>>, vector<2x8x128xf32>
    tpu.vector_store %arg4[%c0_2, %c0_3, %c0_4], %0 {strides = array<i32>} : memref<2x40x128xf32, #tpu.memory_space<vmem>>, vector<2x8x128xf32>,
    %c0_5 = arith.constant 0 : index
    %c0_6 = arith.constant 0 : index
    %c0_7 = arith.constant 0 : index
    %2 = vector.load %arg2[%c0_5, %c0_6, %c0_7] : memref<2x32x128xbf16, #tpu.memory_space<vmem>>, vector<2x32x128xbf16>
    %3 = vector.shape_cast %2 : vector<2x32x128xbf16> to vector<64x128xbf16>
    %c0_8 = arith.constant 0 : index
    %c0_9 = arith.constant 0 : index
    %4 = vector.load %arg3[%c0_8, %c0_9] : memref<128x128xbf16, #tpu.memory_space<vmem>>, vector<128x128xbf16>
    %cst = arith.constant dense<0.000000e+00> : vector<64x128xf32>
    %5 = tpu.matmul %3, %4, %cst {dimension_numbers = #tpu.dot_dimension_numbers<[1], [0], [0], [1], [0, 0, 1, 1], [], []>} : vector<64x128xbf16>, vector<128x128xbf16>, vector<64x128xf32> -> vector<64x128xf32>
    %6 = vector.shape_cast %5 : vector<64x128xf32> to vector<2x32x128xf32>
    %c0_10 = arith.constant 0 : index
    %c8 = arith.constant 8 : index
    %c0_11 = arith.constant 0 : index
    %7 = vector.load %arg4[%c0_10, %c8, %c0_11] : memref<2x40x128xf32, #tpu.memory_space<vmem>>, vector<2x32x128xf32>
    tpu.vector_store %arg4[%c0_10, %c8, %c0_11], %6 {strides = array<i32>} : memref<2x40x128xf32, #tpu.memory_space<vmem>>, vector<2x32x128xf32>,
    return
  }
  func.func @transform_0(%arg0: i32) -> (i32, i32, i32) {
    %c0_i32 = arith.constant 0 : i32
    %c0_i32_0 = arith.constant 0 : i32
    %c0_i32_1 = arith.constant 0 : i32
    return %c0_i32, %c0_i32_0, %arg0 : i32, i32, i32
  }
  func.func @transform_1(%arg0: i32) -> (i32, i32, i32) {
    %c0_i32 = arith.constant 0 : i32
    %c0_i32_0 = arith.constant 0 : i32
    %c0_i32_1 = arith.constant 0 : i32
    %c0_i32_2 = arith.constant 0 : i32
    return %c0_i32, %c0_i32_0, %c0_i32_1 : i32, i32, i32
  }
  func.func @transform_2(%arg0: i32) -> (i32, i32) {
    %c0_i32 = arith.constant 0 : i32
    %c0_i32_0 = arith.constant 0 : i32
    return %c0_i32, %arg0 : i32, i32
  }
  func.func @transform_3(%arg0: i32) -> (i32, i32, i32) {
    %c0_i32 = arith.constant 0 : i32
    %c0_i32_0 = arith.constant 0 : i32
    %c0_i32_1 = arith.constant 0 : i32
    return %c0_i32, %c0_i32_0, %arg0 : i32, i32, i32
  }
}

</mosaic_0001>

<llo_original>
// kernel: _lambda_.3
$region0: #{_lambda_.3}
  #allocation0 [shape = 'u32[]', space=smem, size = 0x4, offset = 0x4, fixed_abs, tag = 'smem constant byte address 0x4 - core index']
  #allocation1 [shape = 'u32[144,128]{1,0:T(1,128)}', space=vmem, size = 0x12000, scoped, tag = 'internal scratch']
  %s0 = inlined_call_operand.vmem [shape: f32[16,256], index: 0, kind: input, shape index: {}]
  %s1 = inlined_call_operand.vmem [shape: bf16[256,128], index: 1, kind: input, shape index: {}]
  %s2 = inlined_call_operand.vmem [shape: f32[16,128], index: 2, kind: output, shape index: {}]
  %s3 = sld [smem:[#allocation0]]
  $region83: #{_lambda_.3} parent=0
    _
  %s5 = ssub.s32 1, %s3
  %s6 = scalar_select 0, %s5, %s3
  $region1: #{_lambda_.3} parent=0
    #allocation2 [shape = 'u8[16384]{0}', space=vmem, size = 0x4000, scoped, tag = 'input window, operand 0']
    loop: start=0, step=1, limit=4
    $region2: #{_lambda_.3} parent=1 // loop_pre_header
      _
    $region3: #{_lambda_.3} parent=1 // loop_header
      %s8 = sphi 0, %s12
      %p9 = scmp.ge.s32.totalorder %s8, 4
      %s15 = sphi 0, %s27
      %s16 = sphi 0, %s23
      %s17 = sphi 0, %s15
      %s18 = sphi 0, %s16
      %s19 = sphi 0, %s17
      %s20 = sphi 0, %s18
      %s32 = sphi 0, %s34
      %s35 = sphi 0, %s32
      %s36 = sphi 0, %s35
      %s52 = sphi 0, %s36
      %s58 = sphi 0, %s60
      %s61 = sphi 0, %s58
      %s62 = sphi 0, %s61
      %s78 = sphi 0, %s62
      %s84 = sphi 0, %s86
      %s87 = sphi 0, %s84
      %s88 = sphi 0, %s87
      %s104 = sphi 0, %s88
    $region4: #{_lambda_.3} parent=1 // loop_header_branch
      %11 = sbr.rel (%p9) target = $region8
    $region5: #{_lambda_.3} parent=1 // loop_body
      %s13 = ssub.s32 %s8, 1
      %s14 = ssub.s32 %s8, 2
      %s21 = sadd.s32 1, %s16
      %p22 = scmp.ge.s32.totalorder %s21, 2
      %s23 = scalar_select %p22, 0, %s21
      %s24 = sadd.s32 1, %s15
      %s25 = scalar_select %p22, %s24, %s15
      %p26 = scmp.ge.s32.totalorder %s25, 1
      %s27 = scalar_select %p26, 0, %s25
      %s28 = ssub.s32 %s15, %s27
      %s29 = ssub.s32 %s16, %s23
      %s30 = sor.u32 %s28, %s29
      %p31 = scmp.eq.s32.totalorder %s30, 0
      %s33 = sadd.s32 %s32, 1
      %s34 = scalar_select %p31, %s32, %s33
      %p37 = pneg %p31
      %p38 = scmp.eq.s32.totalorder %s8, 1
      %p39 = por %p37, %p38
      %p40 = scmp.ne.s32.totalorder %s32, %s35
      %p41 = scmp.eq.s32.totalorder %s8, 0
      %p42 = por %p40, %p41
      %p43 = scmp.ne.s32.totalorder %s32, %s35
      %p44 = scmp.eq.s32.totalorder %s13, 1
      %p45 = por %p43, %p44
      %p46 = scmp.ne.s32.totalorder %s35, %s36
      %p47 = scmp.eq.s32.totalorder %s13, 0
      %p48 = por %p46, %p47
      %p49 = scmp.ne.s32.totalorder %s35, %s36
      %p50 = scmp.eq.s32.totalorder %s14, 1
      %p51 = por %p49, %p50
      %p53 = scmp.ne.s32.totalorder %s36, %s52
      %p54 = scmp.eq.s32.totalorder %s14, 0
      %p55 = por %p53, %p54
      %s56 = ssub.s32 %s16, %s23
      %p57 = scmp.eq.s32.totalorder %s56, 0
      %s59 = sadd.s32 %s58, 1
      %s60 = scalar_select %p57, %s58, %s59
      %p63 = pneg %p57
      %p64 = scmp.eq.s32.totalorder %s8, 1
      %p65 = por %p63, %p64
      %p66 = scmp.ne.s32.totalorder %s58, %s61
      %p67 = scmp.eq.s32.totalorder %s8, 0
      %p68 = por %p66, %p67
      %p69 = scmp.ne.s32.totalorder %s58, %s61
      %p70 = scmp.eq.s32.totalorder %s13, 1
      %p71 = por %p69, %p70
      %p72 = scmp.ne.s32.totalorder %s61, %s62
      %p73 = scmp.eq.s32.totalorder %s13, 0
      %p74 = por %p72, %p73
      %p75 = scmp.ne.s32.totalorder %s61, %s62
      %p76 = scmp.eq.s32.totalorder %s14, 1
      %p77 = por %p75, %p76
      %p79 = scmp.ne.s32.totalorder %s62, %s78
      %p80 = scmp.eq.s32.totalorder %s14, 0
      %p81 = por %p79, %p80
      %s82 = ssub.s32 %s15, %s27
      %p83 = scmp.eq.s32.totalorder %s82, 0
      %s85 = sadd.s32 %s84, 1
      %s86 = scalar_select %p83, %s84, %s85
      %p89 = pneg %p83
      %p90 = scmp.eq.s32.totalorder %s8, 1
      %p91 = por %p89, %p90
      %p92 = scmp.ne.s32.totalorder %s84, %s87
      %p93 = scmp.eq.s32.totalorder %s8, 0
      %p94 = por %p92, %p93
      %p95 = scmp.ne.s32.totalorder %s84, %s87
      %p96 = scmp.eq.s32.totalorder %s13, 1
      %p97 = por %p95, %p96
      %p98 = scmp.ne.s32.totalorder %s87, %s88
      %p99 = scmp.eq.s32.totalorder %s13, 0
      %p100 = por %p98, %p99
      %p101 = scmp.ne.s32.totalorder %s87, %s88
      %p102 = scmp.eq.s32.totalorder %s14, 1
      %p103 = por %p101, %p102
      %p105 = scmp.ne.s32.totalorder %s88, %s104
      %p106 = scmp.eq.s32.totalorder %s14, 0
      %p107 = por %p105, %p106
      %p108 = scmp.le.s32.totalorder 1, %s8
      %p109 = scmp.lt.s32.totalorder %s8, 3
      %p110 = pnand %p108, %p109
      %p111 = pneg %p110
      // Predicated region
      $region9: #{_lambda_.3} parent=5 // pred_check
        _
      $region10: #{_lambda_.3} parent=5 // pred_check_branch
        %113 = sbr.rel (%p110) target = $region12
      $region11: #{_lambda_.3} parent=5 // pred_region
        %s114 = ssub.s32 %s8, 1
      $region12: #{_lambda_.3} parent=5 // pred_fallthru
        _
      %p115 = scmp.lt.s32.totalorder %s8, 2
      // Predicated region
      $region13: #{_lambda_.3} parent=5 // pred_check
        %p116 = pneg %p115
      $region14: #{_lambda_.3} parent=5 // pred_check_branch
        %118 = sbr.rel (%p116) target = $region16
      $region15: #{_lambda_.3} parent=5 // pred_region
        // Predicated region
        $region17: #{_lambda_.3} parent=15 // pred_check
          %p119 = pneg %p42
        $region18: #{_lambda_.3} parent=15 // pred_check_branch
          %121 = sbr.rel (%p119) target = $region20
        $region19: #{_lambda_.3} parent=15 // pred_region
          %s122 = sand.u32 %s32, 1
          %s123 = sand.u32 %s32, 1
          %s124 = smul.addr %s123, 16
          %s125 = scalar_lea.vmem [#allocation2], %s124
          %s126 = smul.u32 2, %s15
          %s127 = smul.addr %s126, 2
          %s128 = sadd.s32 %s16, %s127
          %s129 = smul.addr %s128, 8
          %s130 = scalar_lea.vmem %s0, %s129
          // Predicated region
          $region21: #{_lambda_.3} parent=19 // pred_check
            _
          $region22: #{_lambda_.3} parent=19 // pred_check_branch
            %132 = sbr.rel (0) target = $region24
          $region23: #{_lambda_.3} parent=19 // pred_region
            // Predicated region
            $region25: #{_lambda_.3} parent=23 // pred_check
              _
            $region26: #{_lambda_.3} parent=23 // pred_check_branch
              %134 = sbr.rel (0) target = $region28
            $region27: #{_lambda_.3} parent=23 // pred_region
              // Predicated region
              $region40: #{_lambda_.3} parent=27 // pred_check
                _
              $region41: #{_lambda_.3} parent=27 // pred_check_branch
                %151 = sbr.rel (0) target = $region43
              $region42: #{_lambda_.3} parent=27 // pred_region
                loop: start=0, step=1, limit=1
                $region44: #{_lambda_.3} parent=42 // loop_pre_header
                  _
                $region45: #{_lambda_.3} parent=42 // loop_header
                  %s153 = sphi 0, %s157
                  %p154 = scmp.ge.s32.totalorder %s153, 1
                  %s158 = sphi %s130, %s130
                  %s159 = sphi %s125, %s125
                $region46: #{_lambda_.3} parent=42 // loop_header_branch
                  %156 = sbr.rel (%p154) target = $region50
                $region47: #{_lambda_.3} parent=42 // loop_body
                  %v160 = vld [vmem:[%s158] sm:$0xff]
                  %161 = vst [vmem:[%s159] sm:$0xff] %v160
                  %v162 = vld [vmem:[%s158 + $0x10] sm:$0xff]
                  %163 = vst [vmem:[%s159 + $0x8] sm:$0xff] %v162
                $region48: #{_lambda_.3} parent=42 // loop_footer
                  %s157 = sadd.s32 1, %s153
                $region49: #{_lambda_.3} parent=42 // loop_footer_branch
                  %152 = sbr.rel target = $region45
                $region50: #{_lambda_.3} parent=42 // loop_exit
                  _
              $region43: #{_lambda_.3} parent=27 // pred_fallthru
                _
              // Predicated region
              $region51: #{_lambda_.3} parent=27 // pred_check
                _
              $region52: #{_lambda_.3} parent=27 // pred_check_branch
                %165 = sbr.rel target = $region54
              $region53: #{_lambda_.3} parent=27 // pred_region
                _
              $region54: #{_lambda_.3} parent=27 // pred_fallthru
                _
            $region28: #{_lambda_.3} parent=23 // pred_fallthru
              _
            // Predicated region
            $region29: #{_lambda_.3} parent=23 // pred_check
              _
            $region30: #{_lambda_.3} parent=23 // pred_check_branch
              %136 = sbr.rel target = $region32
            $region31: #{_lambda_.3} parent=23 // pred_region
              loop: start=0, step=1, limit=1
              $region33: #{_lambda_.3} parent=31 // loop_pre_header
                _
              $region34: #{_lambda_.3} parent=31 // loop_header
                %s139 = sphi 0, %s143
                %p140 = scmp.ge.s32.totalorder %s139, 1
                %s144 = sphi %s130, %s130
                %s145 = sphi %s125, %s125
              $region35: #{_lambda_.3} parent=31 // loop_header_branch
                %142 = sbr.rel (%p140) target = $region39
              $region36: #{_lambda_.3} parent=31 // loop_body
                %v146 = vld [vmem:[%s144] sm:$0xff]
                %147 = vst [vmem:[%s145] sm:$0xff] %v146
                %v148 = vld [vmem:[%s144 + $0x10] sm:$0xff]
                %149 = vst [vmem:[%s145 + $0x8] sm:$0xff] %v148
              $region37: #{_lambda_.3} parent=31 // loop_footer
                %s143 = sadd.s32 1, %s139
              $region38: #{_lambda_.3} parent=31 // loop_footer_branch
                %138 = sbr.rel target = $region34
              $region39: #{_lambda_.3} parent=31 // loop_exit
                _
            $region32: #{_lambda_.3} parent=23 // pred_fallthru
              _
          $region24: #{_lambda_.3} parent=19 // pred_fallthru
            _
          %166 = vnop
        $region20: #{_lambda_.3} parent=15 // pred_fallthru
          _
        // Predicated region
        $region55: #{_lambda_.3} parent=15 // pred_check
          %p167 = pneg %p68
        $region56: #{_lambda_.3} parent=15 // pred_check_branch
          %169 = sbr.rel (%p167) target = $region58
        $region57: #{_lambda_.3} parent=15 // pred_region
          %s170 = smul.u32 16, %s16
          %p171 = scmp.lt.s32.totalorder %s170, 31
          %s172 = scalar_select %p171, %s170, 31
          %s173 = smul.addr %s172, 4
          %s174 = scalar_lea.vmem %s1, %s173
          %s175 = smul.u32 16, %s16
        $region58: #{_lambda_.3} parent=15 // pred_fallthru
          _
      $region16: #{_lambda_.3} parent=5 // pred_fallthru
        _
      %p176 = scmp.le.s32.totalorder 1, %s8
      %p177 = scmp.lt.s32.totalorder %s8, 3
      %p178 = pnand %p176, %p177
      %p179 = pneg %p178
      // Predicated region
      $region59: #{_lambda_.3} parent=5 // pred_check
        _
      $region60: #{_lambda_.3} parent=5 // pred_check_branch
        %181 = sbr.rel (%p178) target = $region62
      $region61: #{_lambda_.3} parent=5 // pred_region
        %s182 = ssub.s32 %s8, 1
        %s183 = sand.u32 %s35, 1
        %s184 = sand.u32 %s35, 1
        %s185 = smul.addr %s184, 16
        %s186 = scalar_lea.vmem [#allocation2], %s185
        // Predicated region
        $region63: #{_lambda_.3} parent=61 // pred_check
          %p187 = pneg %p48
        $region64: #{_lambda_.3} parent=61 // pred_check_branch
          %189 = sbr.rel (%p187) target = $region66
        $region65: #{_lambda_.3} parent=61 // pred_region
          _
        $region66: #{_lambda_.3} parent=61 // pred_fallthru
          _
        %s190 = sand.u32 %s35, 1
        %s191 = sand.u32 %s35, 1
        %s192 = smul.addr %s191, 16
        %s193 = scalar_lea.vmem [#allocation2], %s192
        %p194 = pneg %p48
        %p195 = pneg %p45
        %s196 = smul.u32 16, %s18
        %p197 = scmp.lt.s32.totalorder %s196, 31
        %s198 = scalar_select %p197, %s196, 31
        %s199 = smul.addr %s198, 4
        %s200 = scalar_lea.vmem %s1, %s199
        %p201 = pneg %p74
        %p202 = pneg %p71
        %p203 = pneg %p100
        %p204 = pneg %p97
        %s205 = smul.u32 2, %s17
        %p206 = scmp.lt.s32.totalorder %s205, 1
        %s207 = scalar_select %p206, %s205, 1
        %s208 = smul.addr %s207, 8
        %s209 = scalar_lea.vmem %s2, %s208
        %s210 = smul.u32 2, %s17
        %s211 = smul.u32 16, %s18
        %p212 = scmp.lt.s32.totalorder %s211, 31
        %s213 = scalar_select %p212, %s211, 31
        %s214 = smul.addr %s213, 4
        %s215 = scalar_lea.vmem %s1, %s214
        %s216 = smul.u32 16, %s18
        %s217 = smul.u32 2, %s17
        %p218 = scmp.lt.s32.totalorder %s217, 1
        %s219 = scalar_select %p218, %s217, 1
        %s220 = smul.addr %s219, 8
        %s221 = scalar_lea.vmem %s2, %s220
        %s222 = smul.u32 2, %s17
        %p224 = scmp.eq.s32.totalorder %s18, 0
        // Predicated region
        $region67: #{_lambda_.3} parent=61 // pred_check
          %p225 = pneg %p224
        $region68: #{_lambda_.3} parent=61 // pred_check_branch
          %227 = sbr.rel (%p225) target = $region70
        $region69: #{_lambda_.3} parent=61 // pred_region
          %228 = vst [vmem:[%s221] sm:$0xff] 0.0
          %229 = vst [vmem:[%s221 + $0x8] sm:$0xff] 0.0
        $region70: #{_lambda_.3} parent=61 // pred_fallthru
          _
        %v230 = vld [vmem:[%s221] sm:$0xff]
        %v231 = vld [vmem:[%s221 + $0x8] sm:$0xff]
        %v232 = vld [vmem:[%s186] sm:$0xff]
        %v233 = vld [vmem:[%s186 + $0x8] sm:$0xff]
        %v234 = vpack.c.bf16 %v233, %v232
        %v235 = vld [vmem:[%s215] sm:$0xf]
        %v236 = vld [vmem:[%s215 + $0x4] sm:$0xf]
        %v237 = vld [vmem:[%s215 + $0x8] sm:$0xf]
        %v238 = vld [vmem:[%s215 + $0xc] sm:$0xf]
        %v239 = vld [vmem:[%s215 + $0x10] sm:$0xf]
        %v240 = vld [vmem:[%s215 + $0x14] sm:$0xf]
        %v241 = vld [vmem:[%s215 + $0x18] sm:$0xf]
        %v242 = vld [vmem:[%s215 + $0x1c] sm:$0xf]
        %v243 = vld [vmem:[%s215 + $0x20] sm:$0xf]
        %v244 = vld [vmem:[%s215 + $0x24] sm:$0xf]
        %v245 = vld [vmem:[%s215 + $0x28] sm:$0xf]
        %v246 = vld [vmem:[%s215 + $0x2c] sm:$0xf]
        %v247 = vld [vmem:[%s215 + $0x30] sm:$0xf]
        %v248 = vld [vmem:[%s215 + $0x34] sm:$0xf]
        %v249 = vld [vmem:[%s215 + $0x38] sm:$0xf]
        %v250 = vld [vmem:[%s215 + $0x3c] sm:$0xf]
        %v267 = vunpack.c.l.b16 %v235
        %v268 = vunpack.c.l.b16 %v236
        %v269 = vunpack.c.l.b16 %v237
        %v270 = vunpack.c.l.b16 %v238
        %v271 = vunpack.c.l.b16 %v239
        %v272 = vunpack.c.l.b16 %v240
        %v273 = vunpack.c.l.b16 %v241
        %v274 = vunpack.c.l.b16 %v242
        %v275 = vunpack.c.l.b16 %v243
        %v276 = vunpack.c.l.b16 %v244
        %v277 = vunpack.c.l.b16 %v245
        %v278 = vunpack.c.l.b16 %v246
        %v279 = vunpack.c.l.b16 %v247
        %v280 = vunpack.c.l.b16 %v248
        %v281 = vunpack.c.l.b16 %v249
        %v282 = vunpack.c.l.b16 %v250
        %v283 = vpack.c.b16 %v268, %v267
        %v284 = vpack.c.b16 %v270, %v269
        %v285 = vpack.c.b16 %v272, %v271
        %v286 = vpack.c.b16 %v274, %v273
        %v287 = vpack.c.b16 %v276, %v275
        %v288 = vpack.c.b16 %v278, %v277
        %v289 = vpack.c.b16 %v280, %v279
        %v290 = vpack.c.b16 %v282, %v281
        %299 = vmatprep.subr.bf16.mxu0 0
        %300 = vmatpush1.bf16.msra.mxu0 %v283
        %301 = vmatprep.subr.bf16.mxu0 0
        %302 = vmatpush1.bf16.msra.mxu0 %v284
        %303 = vmatprep.subr.bf16.mxu0 0
        %304 = vmatpush1.bf16.msra.mxu0 %v285
        %305 = vmatprep.subr.bf16.mxu0 0
        %306 = vmatpush1.bf16.msra.mxu0 %v286
        %307 = vmatprep.subr.bf16.mxu0 0
        %308 = vmatpush1.bf16.msra.mxu0 %v287
        %309 = vmatprep.subr.bf16.mxu0 0
        %310 = vmatpush1.bf16.msra.mxu0 %v288
        %311 = vmatprep.subr.bf16.mxu0 0
        %312 = vmatpush1.bf16.msra.mxu0 %v289
        %313 = vmatprep.subr.bf16.mxu0 0
        %314 = vmatpush1.bf16.msra.mxu0 %v290
        %315 = vmatprep.subr.bf16.mxu0 0
        %316 = vmatpush1.bf16.msra.mxu0 0
        %317 = vmatprep.subr.bf16.mxu0 0
        %318 = vmatpush1.bf16.msra.mxu0 0
        %319 = vmatprep.subr.bf16.mxu0 0
        %320 = vmatpush1.bf16.msra.mxu0 0
        %321 = vmatprep.subr.bf16.mxu0 0
        %322 = vmatpush1.bf16.msra.mxu0 0
        %323 = vmatprep.subr.bf16.mxu0 0
        %324 = vmatpush1.bf16.msra.mxu0 0
        %325 = vmatprep.subr.bf16.mxu0 0
        %326 = vmatpush1.bf16.msra.mxu0 0
        %327 = vmatprep.subr.bf16.mxu0 0
        %328 = vmatpush1.bf16.msra.mxu0 0
        %329 = vmatprep.subr.bf16.mxu0 0
        %330 = vmatpush1.bf16.msra.mxu0 0
        %331 = vmatprep.mubr.bf16.mxu0 0
        %332 = vmatmul.mubr.bf16.gmra.mrb[0].mxu0 %v234
        %v333 = vpop.f32.mrb[0].mxu0
        %v334 = vadd.f32 0.0, %v333
        %v335 = vpop.f32.mrb[0].mxu0
        %v336 = vpop.f32.mrb[0].mxu0
        %v337 = vadd.f32 0.0, %v336
        %v338 = vpop.f32.mrb[0].mxu0
        %339 = vdwg.mxu0
        %v340 = vadd.f32 %v230, %v334
        %v341 = vadd.f32 %v231, %v337
        %342 = vst [vmem:[%s221] sm:$0xff] %v340
        %343 = vst [vmem:[%s221 + $0x8] sm:$0xff] %v341
        %s344 = smul.u32 2, %s17
        %p345 = scmp.lt.s32.totalorder %s344, 1
        %s346 = scalar_select %p345, %s344, 1
        %s347 = smul.addr %s346, 8
        %s348 = scalar_lea.vmem %s2, %s347
        // Predicated region
        $region71: #{_lambda_.3} parent=61 // pred_check
          %p349 = pneg %p97
        $region72: #{_lambda_.3} parent=61 // pred_check_branch
          %351 = sbr.rel (%p349) target = $region74
        $region73: #{_lambda_.3} parent=61 // pred_region
          %s352 = smul.u32 2, %s17
        $region74: #{_lambda_.3} parent=61 // pred_fallthru
          _
        // Predicated region
        $region75: #{_lambda_.3} parent=61 // pred_check
          %p353 = pneg %p97
        $region76: #{_lambda_.3} parent=61 // pred_check_branch
          %355 = sbr.rel (%p353) target = $region78
        $region77: #{_lambda_.3} parent=61 // pred_region
          %s356 = smul.u32 2, %s17
          %p357 = scmp.lt.s32.totalorder %s356, 1
          %s358 = scalar_select %p357, %s356, 1
          %s359 = smul.addr %s358, 8
          %s360 = scalar_lea.vmem %s2, %s359
        $region78: #{_lambda_.3} parent=61 // pred_fallthru
          _
      $region62: #{_lambda_.3} parent=5 // pred_fallthru
        _
      %p361 = scmp.le.s32.totalorder 2, %s8
      // Predicated region
      $region79: #{_lambda_.3} parent=5 // pred_check
        %p362 = pneg %p361
      $region80: #{_lambda_.3} parent=5 // pred_check_branch
        %364 = sbr.rel (%p362) target = $region82
      $region81: #{_lambda_.3} parent=5 // pred_region
        %s365 = ssub.s32 %s8, 2
      $region82: #{_lambda_.3} parent=5 // pred_fallthru
        _
    $region6: #{_lambda_.3} parent=1 // loop_footer
      %s12 = sadd.s32 1, %s8
    $region7: #{_lambda_.3} parent=1 // loop_footer_branch
      %7 = sbr.rel target = $region3
    $region8: #{_lambda_.3} parent=1 // loop_exit
      _

// kernel: _lambda_.5
$region0: #{_lambda_.5}
  #allocation0 [shape = 'u32[]', space=smem, size = 0x4, offset = 0x4, fixed_abs, tag = 'smem constant byte address 0x4 - core index']
  #allocation1 [shape = 'u32[144,128]{1,0:T(1,128)}', space=vmem, size = 0x12000, scoped, tag = 'internal scratch']
  %s0 = inlined_call_operand.vmem [shape: f32[2,8,256], index: 0, kind: input, shape index: {}]
  %s1 = inlined_call_operand.vmem [shape: bf16[2,32,128], index: 1, kind: input, shape index: {}]
  %s2 = inlined_call_operand.vmem [shape: bf16[128,256], index: 2, kind: input, shape index: {}]
  %s3 = inlined_call_operand.vmem [shape: f32[2,40,256], index: 3, kind: output, shape index: {}]
  %s4 = sld [smem:[#allocation0]]
  $region158: #{_lambda_.5} parent=0
    _
  %s6 = ssub.s32 1, %s4
  %s7 = scalar_select 0, %s6, %s4
  $region1: #{_lambda_.5} parent=0
    #allocation2 [shape = 'u8[16384]{0}', space=vmem, size = 0x4000, scoped, tag = 'input window, operand 0']
    #allocation3 [shape = 'u8[65536]{0}', space=vmem, size = 0x10000, scoped, tag = 'input window, operand 2']
    #allocation4 [shape = 'u8[81920]{0}', space=vmem, size = 0x14000, scoped, tag = 'output window, operand 0']
    loop: start=0, step=1, limit=4
    $region2: #{_lambda_.5} parent=1 // loop_pre_header
      _
    $region3: #{_lambda_.5} parent=1 // loop_header
      %s9 = sphi 0, %s13
      %p10 = scmp.ge.s32.totalorder %s9, 4
      %s19 = sphi 0, %s21
      %s22 = sphi 0, %s19
      %s23 = sphi 0, %s22
      %s39 = sphi 0, %s23
      %s43 = sphi 0, %s43
      %s45 = sphi 0, %s43
      %s46 = sphi 0, %s45
      %s60 = sphi 0, %s46
      %s66 = sphi 0, %s68
      %s69 = sphi 0, %s66
      %s70 = sphi 0, %s69
      %s86 = sphi 0, %s70
      %s92 = sphi 0, %s94
      %s95 = sphi 0, %s92
      %s96 = sphi 0, %s95
      %s112 = sphi 0, %s96
    $region4: #{_lambda_.5} parent=1 // loop_header_branch
      %12 = sbr.rel (%p10) target = $region8
    $region5: #{_lambda_.5} parent=1 // loop_body
      %s14 = ssub.s32 %s9, 1
      %s15 = ssub.s32 %s9, 2
      %s16 = sadd.s32 %s9, 1
      %s17 = ssub.s32 %s9, %s16
      %p18 = scmp.eq.s32.totalorder %s17, 0
      %s20 = sadd.s32 %s19, 1
      %s21 = scalar_select %p18, %s19, %s20
      %p24 = pneg %p18
      %p25 = scmp.eq.s32.totalorder %s9, 1
      %p26 = por %p24, %p25
      %p27 = scmp.ne.s32.totalorder %s19, %s22
      %p28 = scmp.eq.s32.totalorder %s9, 0
      %p29 = por %p27, %p28
      %p30 = scmp.ne.s32.totalorder %s19, %s22
      %p31 = scmp.eq.s32.totalorder %s14, 1
      %p32 = por %p30, %p31
      %p33 = scmp.ne.s32.totalorder %s22, %s23
      %p34 = scmp.eq.s32.totalorder %s14, 0
      %p35 = por %p33, %p34
      %p36 = scmp.ne.s32.totalorder %s22, %s23
      %p37 = scmp.eq.s32.totalorder %s15, 1
      %p38 = por %p36, %p37
      %p40 = scmp.ne.s32.totalorder %s23, %s39
      %p41 = scmp.eq.s32.totalorder %s15, 0
      %p42 = por %p40, %p41
      %s44 = sadd.s32 %s43, 1
      %p47 = scmp.eq.s32.totalorder %s9, 1
      %p48 = scmp.ne.s32.totalorder %s43, %s45
      %p49 = scmp.eq.s32.totalorder %s9, 0
      %p50 = por %p48, %p49
      %p51 = scmp.ne.s32.totalorder %s43, %s45
      %p52 = scmp.eq.s32.totalorder %s14, 1
      %p53 = por %p51, %p52
      %p54 = scmp.ne.s32.totalorder %s45, %s46
      %p55 = scmp.eq.s32.totalorder %s14, 0
      %p56 = por %p54, %p55
      %p57 = scmp.ne.s32.totalorder %s45, %s46
      %p58 = scmp.eq.s32.totalorder %s15, 1
      %p59 = por %p57, %p58
      %p61 = scmp.ne.s32.totalorder %s46, %s60
      %p62 = scmp.eq.s32.totalorder %s15, 0
      %p63 = por %p61, %p62
      %s64 = ssub.s32 %s9, %s16
      %p65 = scmp.eq.s32.totalorder %s64, 0
      %s67 = sadd.s32 %s66, 1
      %s68 = scalar_select %p65, %s66, %s67
      %p71 = pneg %p65
      %p72 = scmp.eq.s32.totalorder %s9, 1
      %p73 = por %p71, %p72
      %p74 = scmp.ne.s32.totalorder %s66, %s69
      %p75 = scmp.eq.s32.totalorder %s9, 0
      %p76 = por %p74, %p75
      %p77 = scmp.ne.s32.totalorder %s66, %s69
      %p78 = scmp.eq.s32.totalorder %s14, 1
      %p79 = por %p77, %p78
      %p80 = scmp.ne.s32.totalorder %s69, %s70
      %p81 = scmp.eq.s32.totalorder %s14, 0
      %p82 = por %p80, %p81
      %p83 = scmp.ne.s32.totalorder %s69, %s70
      %p84 = scmp.eq.s32.totalorder %s15, 1
      %p85 = por %p83, %p84
      %p87 = scmp.ne.s32.totalorder %s70, %s86
      %p88 = scmp.eq.s32.totalorder %s15, 0
      %p89 = por %p87, %p88
      %s90 = ssub.s32 %s9, %s16
      %p91 = scmp.eq.s32.totalorder %s90, 0
      %s93 = sadd.s32 %s92, 1
      %s94 = scalar_select %p91, %s92, %s93
      %p97 = pneg %p91
      %p98 = scmp.eq.s32.totalorder %s9, 1
      %p99 = por %p97, %p98
      %p100 = scmp.ne.s32.totalorder %s92, %s95
      %p101 = scmp.eq.s32.totalorder %s9, 0
      %p102 = por %p100, %p101
      %p103 = scmp.ne.s32.totalorder %s92, %s95
      %p104 = scmp.eq.s32.totalorder %s14, 1
      %p105 = por %p103, %p104
      %p106 = scmp.ne.s32.totalorder %s95, %s96
      %p107 = scmp.eq.s32.totalorder %s14, 0
      %p108 = por %p106, %p107
      %p109 = scmp.ne.s32.totalorder %s95, %s96
      %p110 = scmp.eq.s32.totalorder %s15, 1
      %p111 = por %p109, %p110
      %p113 = scmp.ne.s32.totalorder %s96, %s112
      %p114 = scmp.eq.s32.totalorder %s15, 0
      %p115 = por %p113, %p114
      %p116 = scmp.le.s32.totalorder 1, %s9
      %p117 = scmp.lt.s32.totalorder %s9, 3
      %p118 = pnand %p116, %p117
      %p119 = pneg %p118
      // Predicated region
      $region9: #{_lambda_.5} parent=5 // pred_check
        _
      $region10: #{_lambda_.5} parent=5 // pred_check_branch
        %121 = sbr.rel (%p118) target = $region12
      $region11: #{_lambda_.5} parent=5 // pred_region
        %s122 = ssub.s32 %s9, 1
        // Predicated region
        $region13: #{_lambda_.5} parent=11 // pred_check
          %p123 = pneg %p56
        $region14: #{_lambda_.5} parent=11 // pred_check_branch
          %125 = sbr.rel (%p123) target = $region16
        $region15: #{_lambda_.5} parent=11 // pred_region
          _
        $region16: #{_lambda_.5} parent=11 // pred_fallthru
          _
      $region12: #{_lambda_.5} parent=5 // pred_fallthru
        _
      %p126 = scmp.lt.s32.totalorder %s9, 2
      // Predicated region
      $region17: #{_lambda_.5} parent=5 // pred_check
        %p127 = pneg %p126
      $region18: #{_lambda_.5} parent=5 // pred_check_branch
        %129 = sbr.rel (%p127) target = $region20
      $region19: #{_lambda_.5} parent=5 // pred_region
        // Predicated region
        $region21: #{_lambda_.5} parent=19 // pred_check
          %p130 = pneg %p29
        $region22: #{_lambda_.5} parent=19 // pred_check_branch
          %132 = sbr.rel (%p130) target = $region24
        $region23: #{_lambda_.5} parent=19 // pred_region
          %s133 = sand.u32 %s19, 1
          %s134 = sand.u32 %s19, 1
          %s135 = smul.addr %s134, 16
          %s136 = scalar_lea.vmem [#allocation2], %s135
          %s137 = smul.addr %s9, 8
          %s138 = scalar_lea.vmem %s0, %s137
          // Predicated region
          $region25: #{_lambda_.5} parent=23 // pred_check
            _
          $region26: #{_lambda_.5} parent=23 // pred_check_branch
            %140 = sbr.rel (0) target = $region28
          $region27: #{_lambda_.5} parent=23 // pred_region
            // Predicated region
            $region29: #{_lambda_.5} parent=27 // pred_check
              _
            $region30: #{_lambda_.5} parent=27 // pred_check_branch
              %142 = sbr.rel (0) target = $region32
            $region31: #{_lambda_.5} parent=27 // pred_region
              // Predicated region
              $region44: #{_lambda_.5} parent=31 // pred_check
                _
              $region45: #{_lambda_.5} parent=31 // pred_check_branch
                %159 = sbr.rel (0) target = $region47
              $region46: #{_lambda_.5} parent=31 // pred_region
                loop: start=0, step=1, limit=1
                $region48: #{_lambda_.5} parent=46 // loop_pre_header
                  _
                $region49: #{_lambda_.5} parent=46 // loop_header
                  %s161 = sphi 0, %s165
                  %p162 = scmp.ge.s32.totalorder %s161, 1
                  %s166 = sphi %s138, %s138
                  %s167 = sphi %s136, %s136
                $region50: #{_lambda_.5} parent=46 // loop_header_branch
                  %164 = sbr.rel (%p162) target = $region54
                $region51: #{_lambda_.5} parent=46 // loop_body
                  %v168 = vld [vmem:[%s166] sm:$0xff]
                  %169 = vst [vmem:[%s167] sm:$0xff] %v168
                  %v170 = vld [vmem:[%s166 + $0x10] sm:$0xff]
                  %171 = vst [vmem:[%s167 + $0x8] sm:$0xff] %v170
                $region52: #{_lambda_.5} parent=46 // loop_footer
                  %s165 = sadd.s32 1, %s161
                $region53: #{_lambda_.5} parent=46 // loop_footer_branch
                  %160 = sbr.rel target = $region49
                $region54: #{_lambda_.5} parent=46 // loop_exit
                  _
              $region47: #{_lambda_.5} parent=31 // pred_fallthru
                _
              // Predicated region
              $region55: #{_lambda_.5} parent=31 // pred_check
                _
              $region56: #{_lambda_.5} parent=31 // pred_check_branch
                %173 = sbr.rel target = $region58
              $region57: #{_lambda_.5} parent=31 // pred_region
                _
              $region58: #{_lambda_.5} parent=31 // pred_fallthru
                _
            $region32: #{_lambda_.5} parent=27 // pred_fallthru
              _
            // Predicated region
            $region33: #{_lambda_.5} parent=27 // pred_check
              _
            $region34: #{_lambda_.5} parent=27 // pred_check_branch
              %144 = sbr.rel target = $region36
            $region35: #{_lambda_.5} parent=27 // pred_region
              loop: start=0, step=1, limit=1
              $region37: #{_lambda_.5} parent=35 // loop_pre_header
                _
              $region38: #{_lambda_.5} parent=35 // loop_header
                %s147 = sphi 0, %s151
                %p148 = scmp.ge.s32.totalorder %s147, 1
                %s152 = sphi %s138, %s138
                %s153 = sphi %s136, %s136
              $region39: #{_lambda_.5} parent=35 // loop_header_branch
                %150 = sbr.rel (%p148) target = $region43
              $region40: #{_lambda_.5} parent=35 // loop_body
                %v154 = vld [vmem:[%s152] sm:$0xff]
                %155 = vst [vmem:[%s153] sm:$0xff] %v154
                %v156 = vld [vmem:[%s152 + $0x10] sm:$0xff]
                %157 = vst [vmem:[%s153 + $0x8] sm:$0xff] %v156
              $region41: #{_lambda_.5} parent=35 // loop_footer
                %s151 = sadd.s32 1, %s147
              $region42: #{_lambda_.5} parent=35 // loop_footer_branch
                %146 = sbr.rel target = $region38
              $region43: #{_lambda_.5} parent=35 // loop_exit
                _
            $region36: #{_lambda_.5} parent=27 // pred_fallthru
              _
          $region28: #{_lambda_.5} parent=23 // pred_fallthru
            _
          %174 = vnop
        $region24: #{_lambda_.5} parent=19 // pred_fallthru
          _
        // Predicated region
        $region59: #{_lambda_.5} parent=19 // pred_check
          %p175 = pneg %p76
        $region60: #{_lambda_.5} parent=19 // pred_check_branch
          %177 = sbr.rel (%p175) target = $region62
        $region61: #{_lambda_.5} parent=19 // pred_region
          %s178 = sand.u32 %s66, 1
          %s179 = sand.u32 %s66, 1
          %s180 = smul.addr %s179, 64
          %s181 = scalar_lea.vmem [#allocation3], %s180
          %s182 = smul.addr %s9, 4
          %s183 = scalar_lea.vmem %s2, %s182
          // Predicated region
          $region63: #{_lambda_.5} parent=61 // pred_check
            _
          $region64: #{_lambda_.5} parent=61 // pred_check_branch
            %185 = sbr.rel (0) target = $region66
          $region65: #{_lambda_.5} parent=61 // pred_region
            // Predicated region
            $region67: #{_lambda_.5} parent=65 // pred_check
              _
            $region68: #{_lambda_.5} parent=65 // pred_check_branch
              %187 = sbr.rel target = $region70
            $region69: #{_lambda_.5} parent=65 // pred_region
              // Predicated region
              $region82: #{_lambda_.5} parent=69 // pred_check
                _
              $region83: #{_lambda_.5} parent=69 // pred_check_branch
                %232 = sbr.rel (0) target = $region85
              $region84: #{_lambda_.5} parent=69 // pred_region
                loop: start=0, step=1, limit=1
                $region86: #{_lambda_.5} parent=84 // loop_pre_header
                  _
                $region87: #{_lambda_.5} parent=84 // loop_header
                  %s234 = sphi 0, %s238
                  %p235 = scmp.ge.s32.totalorder %s234, 1
                  %s239 = sphi %s183, %s183
                  %s240 = sphi %s181, %s181
                $region88: #{_lambda_.5} parent=84 // loop_header_branch
                  %237 = sbr.rel (%p235) target = $region92
                $region89: #{_lambda_.5} parent=84 // loop_body
                  _
                $region90: #{_lambda_.5} parent=84 // loop_footer
                  %s238 = sadd.s32 1, %s234
                $region91: #{_lambda_.5} parent=84 // loop_footer_branch
                  %233 = sbr.rel target = $region87
                $region92: #{_lambda_.5} parent=84 // loop_exit
                  _
                loop: start=0, step=1, limit=1
                $region93: #{_lambda_.5} parent=84 // loop_pre_header
                  _
                $region94: #{_lambda_.5} parent=84 // loop_header
                  %s243 = sphi 0, %s247
                  %p244 = scmp.ge.s32.totalorder %s243, 1
                  %s248 = sphi %s183, %s183
                  %s249 = sphi %s181, %s181
                $region95: #{_lambda_.5} parent=84 // loop_header_branch
                  %246 = sbr.rel (%p244) target = $region99
                $region96: #{_lambda_.5} parent=84 // loop_body
                  %v250 = vld [vmem:[%s248] sm:$0xf]
                  %251 = vst [vmem:[%s249] sm:$0xf] %v250
                  %v252 = vld [vmem:[%s248 + $0x8] sm:$0xf]
                  %253 = vst [vmem:[%s249 + $0x4] sm:$0xf] %v252
                  %v254 = vld [vmem:[%s248 + $0x10] sm:$0xf]
                  %255 = vst [vmem:[%s249 + $0x8] sm:$0xf] %v254
                  %v256 = vld [vmem:[%s248 + $0x18] sm:$0xf]
                  %257 = vst [vmem:[%s249 + $0xc] sm:$0xf] %v256
                  %v258 = vld [vmem:[%s248 + $0x20] sm:$0xf]
                  %259 = vst [vmem:[%s249 + $0x10] sm:$0xf] %v258
                  %v260 = vld [vmem:[%s248 + $0x28] sm:$0xf]
                  %261 = vst [vmem:[%s249 + $0x14] sm:$0xf] %v260
                  %v262 = vld [vmem:[%s248 + $0x30] sm:$0xf]
                  %263 = vst [vmem:[%s249 + $0x18] sm:$0xf] %v262
                  %v264 = vld [vmem:[%s248 + $0x38] sm:$0xf]
                  %265 = vst [vmem:[%s249 + $0x1c] sm:$0xf] %v264
                  %v266 = vld [vmem:[%s248 + $0x40] sm:$0xf]
                  %267 = vst [vmem:[%s249 + $0x20] sm:$0xf] %v266
                  %v268 = vld [vmem:[%s248 + $0x48] sm:$0xf]
                  %269 = vst [vmem:[%s249 + $0x24] sm:$0xf] %v268
                  %v270 = vld [vmem:[%s248 + $0x50] sm:$0xf]
                  %271 = vst [vmem:[%s249 + $0x28] sm:$0xf] %v270
                  %v272 = vld [vmem:[%s248 + $0x58] sm:$0xf]
                  %273 = vst [vmem:[%s249 + $0x2c] sm:$0xf] %v272
                  %v274 = vld [vmem:[%s248 + $0x60] sm:$0xf]
                  %275 = vst [vmem:[%s249 + $0x30] sm:$0xf] %v274
                  %v276 = vld [vmem:[%s248 + $0x68] sm:$0xf]
                  %277 = vst [vmem:[%s249 + $0x34] sm:$0xf] %v276
                  %v278 = vld [vmem:[%s248 + $0x70] sm:$0xf]
                  %279 = vst [vmem:[%s249 + $0x38] sm:$0xf] %v278
                  %v280 = vld [vmem:[%s248 + $0x78] sm:$0xf]
                  %281 = vst [vmem:[%s249 + $0x3c] sm:$0xf] %v280
                $region97: #{_lambda_.5} parent=84 // loop_footer
                  %s247 = sadd.s32 1, %s243
                $region98: #{_lambda_.5} parent=84 // loop_footer_branch
                  %242 = sbr.rel target = $region94
                $region99: #{_lambda_.5} parent=84 // loop_exit
                  _
              $region85: #{_lambda_.5} parent=69 // pred_fallthru
                _
            $region70: #{_lambda_.5} parent=65 // pred_fallthru
              _
            // Predicated region
            $region71: #{_lambda_.5} parent=65 // pred_check
              _
            $region72: #{_lambda_.5} parent=65 // pred_check_branch
              %189 = sbr.rel (0) target = $region74
            $region73: #{_lambda_.5} parent=65 // pred_region
              loop: start=0, step=1, limit=1
              $region75: #{_lambda_.5} parent=73 // loop_pre_header
                _
              $region76: #{_lambda_.5} parent=73 // loop_header
                %s192 = sphi 0, %s196
                %p193 = scmp.ge.s32.totalorder %s192, 1
                %s197 = sphi %s183, %s183
                %s198 = sphi %s181, %s181
              $region77: #{_lambda_.5} parent=73 // loop_header_branch
                %195 = sbr.rel (%p193) target = $region81
              $region78: #{_lambda_.5} parent=73 // loop_body
                %v199 = vld [vmem:[%s197] sm:$0xf]
                %200 = vst [vmem:[%s198] sm:$0xf] %v199
                %v201 = vld [vmem:[%s197 + $0x8] sm:$0xf]
                %202 = vst [vmem:[%s198 + $0x4] sm:$0xf] %v201
                %v203 = vld [vmem:[%s197 + $0x10] sm:$0xf]
                %204 = vst [vmem:[%s198 + $0x8] sm:$0xf] %v203
                %v205 = vld [vmem:[%s197 + $0x18] sm:$0xf]
                %206 = vst [vmem:[%s198 + $0xc] sm:$0xf] %v205
                %v207 = vld [vmem:[%s197 + $0x20] sm:$0xf]
                %208 = vst [vmem:[%s198 + $0x10] sm:$0xf] %v207
                %v209 = vld [vmem:[%s197 + $0x28] sm:$0xf]
                %210 = vst [vmem:[%s198 + $0x14] sm:$0xf] %v209
                %v211 = vld [vmem:[%s197 + $0x30] sm:$0xf]
                %212 = vst [vmem:[%s198 + $0x18] sm:$0xf] %v211
                %v213 = vld [vmem:[%s197 + $0x38] sm:$0xf]
                %214 = vst [vmem:[%s198 + $0x1c] sm:$0xf] %v213
                %v215 = vld [vmem:[%s197 + $0x40] sm:$0xf]
                %216 = vst [vmem:[%s198 + $0x20] sm:$0xf] %v215
                %v217 = vld [vmem:[%s197 + $0x48] sm:$0xf]
                %218 = vst [vmem:[%s198 + $0x24] sm:$0xf] %v217
                %v219 = vld [vmem:[%s197 + $0x50] sm:$0xf]
                %220 = vst [vmem:[%s198 + $0x28] sm:$0xf] %v219
                %v221 = vld [vmem:[%s197 + $0x58] sm:$0xf]
                %222 = vst [vmem:[%s198 + $0x2c] sm:$0xf] %v221
                %v223 = vld [vmem:[%s197 + $0x60] sm:$0xf]
                %224 = vst [vmem:[%s198 + $0x30] sm:$0xf] %v223
                %v225 = vld [vmem:[%s197 + $0x68] sm:$0xf]
                %226 = vst [vmem:[%s198 + $0x34] sm:$0xf] %v225
                %v227 = vld [vmem:[%s197 + $0x70] sm:$0xf]
                %228 = vst [vmem:[%s198 + $0x38] sm:$0xf] %v227
                %v229 = vld [vmem:[%s197 + $0x78] sm:$0xf]
                %230 = vst [vmem:[%s198 + $0x3c] sm:$0xf] %v229
              $region79: #{_lambda_.5} parent=73 // loop_footer
                %s196 = sadd.s32 1, %s192
              $region80: #{_lambda_.5} parent=73 // loop_footer_branch
                %191 = sbr.rel target = $region76
              $region81: #{_lambda_.5} parent=73 // loop_exit
                _
            $region74: #{_lambda_.5} parent=65 // pred_fallthru
              _
          $region66: #{_lambda_.5} parent=61 // pred_fallthru
            _
          %282 = vnop
        $region62: #{_lambda_.5} parent=19 // pred_fallthru
          _
      $region20: #{_lambda_.5} parent=5 // pred_fallthru
        _
      %p283 = scmp.le.s32.totalorder 1, %s9
      %p284 = scmp.lt.s32.totalorder %s9, 3
      %p285 = pnand %p283, %p284
      %p286 = pneg %p285
      // Predicated region
      $region100: #{_lambda_.5} parent=5 // pred_check
        _
      $region101: #{_lambda_.5} parent=5 // pred_check_branch
        %288 = sbr.rel (%p285) target = $region103
      $region102: #{_lambda_.5} parent=5 // pred_region
        %s289 = ssub.s32 %s9, 1
        %s290 = sand.u32 %s22, 1
        %s291 = sand.u32 %s22, 1
        %s292 = smul.addr %s291, 16
        %s293 = scalar_lea.vmem [#allocation2], %s292
        // Predicated region
        $region104: #{_lambda_.5} parent=102 // pred_check
          %p294 = pneg %p35
        $region105: #{_lambda_.5} parent=102 // pred_check_branch
          %296 = sbr.rel (%p294) target = $region107
        $region106: #{_lambda_.5} parent=102 // pred_region
          _
        $region107: #{_lambda_.5} parent=102 // pred_fallthru
          _
        %s297 = sand.u32 %s69, 1
        %s298 = sand.u32 %s69, 1
        %s299 = smul.addr %s298, 64
        %s300 = scalar_lea.vmem [#allocation3], %s299
        // Predicated region
        $region108: #{_lambda_.5} parent=102 // pred_check
          %p301 = pneg %p82
        $region109: #{_lambda_.5} parent=102 // pred_check_branch
          %303 = sbr.rel (%p301) target = $region111
        $region110: #{_lambda_.5} parent=102 // pred_region
          _
        $region111: #{_lambda_.5} parent=102 // pred_fallthru
          _
        %s304 = sand.u32 %s22, 1
        %s305 = sand.u32 %s22, 1
        %s306 = smul.addr %s305, 16
        %s307 = scalar_lea.vmem [#allocation2], %s306
        %p308 = pneg %p35
        %p309 = pneg %p32
        %p310 = pneg %p56
        %p311 = pneg %p53
        %s312 = sand.u32 %s69, 1
        %s313 = sand.u32 %s69, 1
        %s314 = smul.addr %s313, 64
        %s315 = scalar_lea.vmem [#allocation3], %s314
        %p316 = pneg %p82
        %p317 = pneg %p79
        %p318 = pneg %p108
        %p319 = pneg %p105
        %s320 = sand.u32 %s95, 1
        %s321 = sand.u32 %s95, 1
        %s322 = smul.addr %s321, 80
        %s323 = scalar_lea.vmem [#allocation4], %s322
        %v325 = vld [vmem:[%s293] sm:$0xff]
        %v326 = vld [vmem:[%s293 + $0x8] sm:$0xff]
        %327 = vst [vmem:[%s323] sm:$0xff] %v325
        %328 = vst [vmem:[%s323 + $0x28] sm:$0xff] %v326
        %v329 = vld [vmem:[%s1] sm:$0xf]
        %v330 = vld [vmem:[%s1 + $0x4] sm:$0xf]
        %v331 = vld [vmem:[%s1 + $0x8] sm:$0xf]
        %v332 = vld [vmem:[%s1 + $0xc] sm:$0xf]
        %v333 = vld [vmem:[%s1 + $0x10] sm:$0xf]
        %v334 = vld [vmem:[%s1 + $0x14] sm:$0xf]
        %v335 = vld [vmem:[%s1 + $0x18] sm:$0xf]
        %v336 = vld [vmem:[%s1 + $0x1c] sm:$0xf]
        %v337 = vld [vmem:[%s300] sm:$0xf]
        %v338 = vld [vmem:[%s300 + $0x4] sm:$0xf]
        %v339 = vld [vmem:[%s300 + $0x8] sm:$0xf]
        %v340 = vld [vmem:[%s300 + $0xc] sm:$0xf]
        %v341 = vld [vmem:[%s300 + $0x10] sm:$0xf]
        %v342 = vld [vmem:[%s300 + $0x14] sm:$0xf]
        %v343 = vld [vmem:[%s300 + $0x18] sm:$0xf]
        %v344 = vld [vmem:[%s300 + $0x1c] sm:$0xf]
        %v345 = vld [vmem:[%s300 + $0x20] sm:$0xf]
        %v346 = vld [vmem:[%s300 + $0x24] sm:$0xf]
        %v347 = vld [vmem:[%s300 + $0x28] sm:$0xf]
        %v348 = vld [vmem:[%s300 + $0x2c] sm:$0xf]
        %v349 = vld [vmem:[%s300 + $0x30] sm:$0xf]
        %v350 = vld [vmem:[%s300 + $0x34] sm:$0xf]
        %v351 = vld [vmem:[%s300 + $0x38] sm:$0xf]
        %v352 = vld [vmem:[%s300 + $0x3c] sm:$0xf]
        %v361 = vunpack.c.l.b16 %v329
        %v362 = vunpack.c.l.b16 %v330
        %v363 = vunpack.c.l.b16 %v331
        %v364 = vunpack.c.l.b16 %v332
        %v365 = vunpack.c.l.b16 %v333
        %v366 = vunpack.c.l.b16 %v334
        %v367 = vunpack.c.l.b16 %v335
        %v368 = vunpack.c.l.b16 %v336
        %v369 = vpack.c.b16 %v362, %v361
        %v370 = vpack.c.b16 %v364, %v363
        %v371 = vpack.c.b16 %v366, %v365
        %v372 = vpack.c.b16 %v368, %v367
        %v393 = vunpack.c.l.b16 %v337
        %v394 = vunpack.c.l.b16 %v338
        %v395 = vunpack.c.l.b16 %v339
        %v396 = vunpack.c.l.b16 %v340
        %v397 = vunpack.c.l.b16 %v341
        %v398 = vunpack.c.l.b16 %v342
        %v399 = vunpack.c.l.b16 %v343
        %v400 = vunpack.c.l.b16 %v344
        %v401 = vunpack.c.l.b16 %v345
        %v402 = vunpack.c.l.b16 %v346
        %v403 = vunpack.c.l.b16 %v347
        %v404 = vunpack.c.l.b16 %v348
        %v405 = vunpack.c.l.b16 %v349
        %v406 = vunpack.c.l.b16 %v350
        %v407 = vunpack.c.l.b16 %v351
        %v408 = vunpack.c.l.b16 %v352
        %v409 = vpack.c.b16 %v394, %v393
        %v410 = vpack.c.b16 %v396, %v395
        %v411 = vpack.c.b16 %v398, %v397
        %v412 = vpack.c.b16 %v400, %v399
        %v413 = vpack.c.b16 %v402, %v401
        %v414 = vpack.c.b16 %v404, %v403
        %v415 = vpack.c.b16 %v406, %v405
        %v416 = vpack.c.b16 %v408, %v407
        %425 = vmatprep.subr.bf16.mxu0 0
        %426 = vmatpush1.bf16.msra.mxu0 %v409
        %427 = vmatprep.subr.bf16.mxu0 0
        %428 = vmatpush1.bf16.msra.mxu0 %v410
        %429 = vmatprep.subr.bf16.mxu0 0
        %430 = vmatpush1.bf16.msra.mxu0 %v411
        %431 = vmatprep.subr.bf16.mxu0 0
        %432 = vmatpush1.bf16.msra.mxu0 %v412
        %433 = vmatprep.subr.bf16.mxu0 0
        %434 = vmatpush1.bf16.msra.mxu0 %v413
        %435 = vmatprep.subr.bf16.mxu0 0
        %436 = vmatpush1.bf16.msra.mxu0 %v414
        %437 = vmatprep.subr.bf16.mxu0 0
        %438 = vmatpush1.bf16.msra.mxu0 %v415
        %439 = vmatprep.subr.bf16.mxu0 0
        %440 = vmatpush1.bf16.msra.mxu0 %v416
        %441 = vmatprep.subr.bf16.mxu0 0
        %442 = vmatpush1.bf16.msra.mxu0 0
        %443 = vmatprep.subr.bf16.mxu0 0
        %444 = vmatpush1.bf16.msra.mxu0 0
        %445 = vmatprep.subr.bf16.mxu0 0
        %446 = vmatpush1.bf16.msra.mxu0 0
        %447 = vmatprep.subr.bf16.mxu0 0
        %448 = vmatpush1.bf16.msra.mxu0 0
        %449 = vmatprep.subr.bf16.mxu0 0
        %450 = vmatpush1.bf16.msra.mxu0 0
        %451 = vmatprep.subr.bf16.mxu0 0
        %452 = vmatpush1.bf16.msra.mxu0 0
        %453 = vmatprep.subr.bf16.mxu0 0
        %454 = vmatpush1.bf16.msra.mxu0 0
        %455 = vmatprep.subr.bf16.mxu0 0
        %456 = vmatpush1.bf16.msra.mxu0 0
        %457 = vmatprep.mubr.bf16.mxu0 0
        %458 = vmatmul.mubr.bf16.gmra.mrb[0].mxu0 %v369
        %v459 = vpop.f32.mrb[0].mxu0
        %v460 = vadd.f32 0.0, %v459
        %v461 = vpop.f32.mrb[0].mxu0
        %v462 = vpop.f32.mrb[0].mxu0
        %v463 = vadd.f32 0.0, %v462
        %v464 = vpop.f32.mrb[0].mxu0
        %465 = vmatprep.mubr.bf16.mxu0 0
        %466 = vmatmul.mubr.bf16.gmra.mrb[0].mxu0 %v370
        %v467 = vpop.f32.mrb[0].mxu0
        %v468 = vadd.f32 0.0, %v467
        %v469 = vpop.f32.mrb[0].mxu0
        %v470 = vpop.f32.mrb[0].mxu0
        %v471 = vadd.f32 0.0, %v470
        %v472 = vpop.f32.mrb[0].mxu0
        %473 = vmatprep.mubr.bf16.mxu0 0
        %474 = vmatmul.mubr.bf16.gmra.mrb[0].mxu0 %v371
        %v475 = vpop.f32.mrb[0].mxu0
        %v476 = vadd.f32 0.0, %v475
        %v477 = vpop.f32.mrb[0].mxu0
        %v478 = vpop.f32.mrb[0].mxu0
        %v479 = vadd.f32 0.0, %v478
        %v480 = vpop.f32.mrb[0].mxu0
        %481 = vmatprep.mubr.bf16.mxu0 0
        %482 = vmatmul.mubr.bf16.gmra.mrb[0].mxu0 %v372
        %v483 = vpop.f32.mrb[0].mxu0
        %v484 = vadd.f32 0.0, %v483
        %v485 = vpop.f32.mrb[0].mxu0
        %v486 = vpop.f32.mrb[0].mxu0
        %v487 = vadd.f32 0.0, %v486
        %v488 = vpop.f32.mrb[0].mxu0
        %489 = vdwg.mxu0
        %490 = vst [vmem:[%s323 + $0x8] sm:$0xff] %v460
        %491 = vst [vmem:[%s323 + $0x10] sm:$0xff] %v463
        %492 = vst [vmem:[%s323 + $0x18] sm:$0xff] %v468
        %493 = vst [vmem:[%s323 + $0x20] sm:$0xff] %v471
        %494 = vst [vmem:[%s323 + $0x30] sm:$0xff] %v476
        %495 = vst [vmem:[%s323 + $0x38] sm:$0xff] %v479
        %496 = vst [vmem:[%s323 + $0x40] sm:$0xff] %v484
        %497 = vst [vmem:[%s323 + $0x48] sm:$0xff] %v487
        %s498 = sand.u32 %s95, 1
        %s499 = sand.u32 %s95, 1
        %s500 = smul.addr %s499, 80
        %s501 = scalar_lea.vmem [#allocation4], %s500
        // Predicated region
        $region112: #{_lambda_.5} parent=102 // pred_check
          %p502 = pneg %p105
        $region113: #{_lambda_.5} parent=102 // pred_check_branch
          %504 = sbr.rel (%p502) target = $region115
        $region114: #{_lambda_.5} parent=102 // pred_region
          %s505 = smul.addr %s14, 8
          %s506 = scalar_lea.vmem %s3, %s505
          // Predicated region
          $region116: #{_lambda_.5} parent=114 // pred_check
            _
          $region117: #{_lambda_.5} parent=114 // pred_check_branch
            %508 = sbr.rel (0) target = $region119
          $region118: #{_lambda_.5} parent=114 // pred_region
            // Predicated region
            $region120: #{_lambda_.5} parent=118 // pred_check
              _
            $region121: #{_lambda_.5} parent=118 // pred_check_branch
              %510 = sbr.rel (0) target = $region123
            $region122: #{_lambda_.5} parent=118 // pred_region
              // Predicated region
              $region135: #{_lambda_.5} parent=122 // pred_check
                _
              $region136: #{_lambda_.5} parent=122 // pred_check_branch
                %543 = sbr.rel (0) target = $region138
              $region137: #{_lambda_.5} parent=122 // pred_region
                loop: start=0, step=1, limit=1
                $region139: #{_lambda_.5} parent=137 // loop_pre_header
                  _
                $region140: #{_lambda_.5} parent=137 // loop_header
                  %s545 = sphi 0, %s549
                  %p546 = scmp.ge.s32.totalorder %s545, 1
                  %s550 = sphi %s501, %s501
                  %s551 = sphi %s506, %s506
                $region141: #{_lambda_.5} parent=137 // loop_header_branch
                  %548 = sbr.rel (%p546) target = $region145
                $region142: #{_lambda_.5} parent=137 // loop_body
                  %v552 = vld [vmem:[%s550] sm:$0xff]
                  %553 = vst [vmem:[%s551] sm:$0xff] %v552
                  %v554 = vld [vmem:[%s550 + $0x8] sm:$0xff]
                  %555 = vst [vmem:[%s551 + $0x10] sm:$0xff] %v554
                  %v556 = vld [vmem:[%s550 + $0x10] sm:$0xff]
                  %557 = vst [vmem:[%s551 + $0x20] sm:$0xff] %v556
                  %v558 = vld [vmem:[%s550 + $0x18] sm:$0xff]
                  %559 = vst [vmem:[%s551 + $0x30] sm:$0xff] %v558
                  %v560 = vld [vmem:[%s550 + $0x20] sm:$0xff]
                  %561 = vst [vmem:[%s551 + $0x40] sm:$0xff] %v560
                  %v562 = vld [vmem:[%s550 + $0x28] sm:$0xff]
                  %563 = vst [vmem:[%s551 + $0x50] sm:$0xff] %v562
                  %v564 = vld [vmem:[%s550 + $0x30] sm:$0xff]
                  %565 = vst [vmem:[%s551 + $0x60] sm:$0xff] %v564
                  %v566 = vld [vmem:[%s550 + $0x38] sm:$0xff]
                  %567 = vst [vmem:[%s551 + $0x70] sm:$0xff] %v566
                  %v568 = vld [vmem:[%s550 + $0x40] sm:$0xff]
                  %569 = vst [vmem:[%s551 + $0x80] sm:$0xff] %v568
                  %v570 = vld [vmem:[%s550 + $0x48] sm:$0xff]
                  %571 = vst [vmem:[%s551 + $0x90] sm:$0xff] %v570
                $region143: #{_lambda_.5} parent=137 // loop_footer
                  %s549 = sadd.s32 1, %s545
                $region144: #{_lambda_.5} parent=137 // loop_footer_branch
                  %544 = sbr.rel target = $region140
                $region145: #{_lambda_.5} parent=137 // loop_exit
                  _
              $region138: #{_lambda_.5} parent=122 // pred_fallthru
                _
              // Predicated region
              $region146: #{_lambda_.5} parent=122 // pred_check
                _
              $region147: #{_lambda_.5} parent=122 // pred_check_branch
                %573 = sbr.rel target = $region149
              $region148: #{_lambda_.5} parent=122 // pred_region
                _
              $region149: #{_lambda_.5} parent=122 // pred_fallthru
                _
            $region123: #{_lambda_.5} parent=118 // pred_fallthru
              _
            // Predicated region
            $region124: #{_lambda_.5} parent=118 // pred_check
              _
            $region125: #{_lambda_.5} parent=118 // pred_check_branch
              %512 = sbr.rel target = $region127
            $region126: #{_lambda_.5} parent=118 // pred_region
              loop: start=0, step=1, limit=1
              $region128: #{_lambda_.5} parent=126 // loop_pre_header
                _
              $region129: #{_lambda_.5} parent=126 // loop_header
                %s515 = sphi 0, %s519
                %p516 = scmp.ge.s32.totalorder %s515, 1
                %s520 = sphi %s501, %s501
                %s521 = sphi %s506, %s506
              $region130: #{_lambda_.5} parent=126 // loop_header_branch
                %518 = sbr.rel (%p516) target = $region134
              $region131: #{_lambda_.5} parent=126 // loop_body
                %v522 = vld [vmem:[%s520] sm:$0xff]
                %523 = vst [vmem:[%s521] sm:$0xff] %v522
                %v524 = vld [vmem:[%s520 + $0x8] sm:$0xff]
                %525 = vst [vmem:[%s521 + $0x10] sm:$0xff] %v524
                %v526 = vld [vmem:[%s520 + $0x10] sm:$0xff]
                %527 = vst [vmem:[%s521 + $0x20] sm:$0xff] %v526
                %v528 = vld [vmem:[%s520 + $0x18] sm:$0xff]
                %529 = vst [vmem:[%s521 + $0x30] sm:$0xff] %v528
                %v530 = vld [vmem:[%s520 + $0x20] sm:$0xff]
                %531 = vst [vmem:[%s521 + $0x40] sm:$0xff] %v530
                %v532 = vld [vmem:[%s520 + $0x28] sm:$0xff]
                %533 = vst [vmem:[%s521 + $0x50] sm:$0xff] %v532
                %v534 = vld [vmem:[%s520 + $0x30] sm:$0xff]
                %535 = vst [vmem:[%s521 + $0x60] sm:$0xff] %v534
                %v536 = vld [vmem:[%s520 + $0x38] sm:$0xff]
                %537 = vst [vmem:[%s521 + $0x70] sm:$0xff] %v536
                %v538 = vld [vmem:[%s520 + $0x40] sm:$0xff]
                %539 = vst [vmem:[%s521 + $0x80] sm:$0xff] %v538
                %v540 = vld [vmem:[%s520 + $0x48] sm:$0xff]
                %541 = vst [vmem:[%s521 + $0x90] sm:$0xff] %v540
              $region132: #{_lambda_.5} parent=126 // loop_footer
                %s519 = sadd.s32 1, %s515
              $region133: #{_lambda_.5} parent=126 // loop_footer_branch
                %514 = sbr.rel target = $region129
              $region134: #{_lambda_.5} parent=126 // loop_exit
                _
            $region127: #{_lambda_.5} parent=118 // pred_fallthru
              _
          $region119: #{_lambda_.5} parent=114 // pred_fallthru
            _
          %574 = vnop
        $region115: #{_lambda_.5} parent=102 // pred_fallthru
          _
      $region103: #{_lambda_.5} parent=5 // pred_fallthru
        _
      %p575 = scmp.le.s32.totalorder 2, %s9
      // Predicated region
      $region150: #{_lambda_.5} parent=5 // pred_check
        %p576 = pneg %p575
      $region151: #{_lambda_.5} parent=5 // pred_check_branch
        %578 = sbr.rel (%p576) target = $region153
      $region152: #{_lambda_.5} parent=5 // pred_region
        %s579 = ssub.s32 %s9, 2
        // Predicated region
        $region154: #{_lambda_.5} parent=152 // pred_check
          %p580 = pneg %p111
        $region155: #{_lambda_.5} parent=152 // pred_check_branch
          %582 = sbr.rel (%p580) target = $region157
        $region156: #{_lambda_.5} parent=152 // pred_region
          %s583 = sand.u32 %s96, 1
          %s584 = sand.u32 %s96, 1
          %s585 = smul.addr %s584, 80
          %s586 = scalar_lea.vmem [#allocation4], %s585
        $region157: #{_lambda_.5} parent=152 // pred_fallthru
          _
      $region153: #{_lambda_.5} parent=5 // pred_fallthru
        _
    $region6: #{_lambda_.5} parent=1 // loop_footer
      %s13 = sadd.s32 1, %s9
    $region7: #{_lambda_.5} parent=1 // loop_footer_branch
      %8 = sbr.rel target = $region3
    $region8: #{_lambda_.5} parent=1 // loop_exit
      _

// kernel: _lambda_.4
$region0: #{_lambda_.4}
  #allocation0 [shape = 'u32[]', space=smem, size = 0x4, offset = 0x4, fixed_abs, tag = 'smem constant byte address 0x4 - core index']
  #allocation1 [shape = 'u32[144,128]{1,0:T(1,128)}', space=vmem, size = 0x12000, scoped, tag = 'internal scratch']
  %s0 = inlined_call_operand.vmem [shape: f32[16,128], index: 0, kind: input, shape index: {}]
  %s1 = inlined_call_operand.vmem [shape: bf16[32,8], index: 1, kind: input, shape index: {}]
  %s2 = inlined_call_operand.vmem [shape: f32[32,1], index: 2, kind: input, shape index: {}]
  %s3 = inlined_call_operand.vmem [shape: f32[32,1], index: 3, kind: input, shape index: {}]
  %s4 = inlined_call_operand.vmem [shape: f32[32,128], index: 4, kind: input, shape index: {}]
  %s5 = inlined_call_operand.vmem [shape: f32[32,1], index: 5, kind: input, shape index: {}]
  %s6 = inlined_call_operand.vmem [shape: bf16[2,32,128], index: 6, kind: output, shape index: {}]
  %s7 = sld [smem:[#allocation0]]
  $region34: #{_lambda_.4} parent=0
    _
  %s9 = ssub.s32 1, %s7
  %s10 = scalar_select 0, %s9, %s7
  // Predicated region
  $region2: #{_lambda_.4} parent=0 // pred_check
    _
  $region3: #{_lambda_.4} parent=0 // pred_check_branch
    %12 = sbr.rel (0) target = $region5
  $region4: #{_lambda_.4} parent=0 // pred_region
    _
  $region5: #{_lambda_.4} parent=0 // pred_fallthru
    _
  // Predicated region
  $region6: #{_lambda_.4} parent=0 // pred_check
    _
  $region7: #{_lambda_.4} parent=0 // pred_check_branch
    %14 = sbr.rel (0) target = $region9
  $region8: #{_lambda_.4} parent=0 // pred_region
    _
  $region9: #{_lambda_.4} parent=0 // pred_fallthru
    _
  // Predicated region
  $region10: #{_lambda_.4} parent=0 // pred_check
    _
  $region11: #{_lambda_.4} parent=0 // pred_check_branch
    %16 = sbr.rel (0) target = $region13
  $region12: #{_lambda_.4} parent=0 // pred_region
    _
  $region13: #{_lambda_.4} parent=0 // pred_fallthru
    _
  // Predicated region
  $region14: #{_lambda_.4} parent=0 // pred_check
    _
  $region15: #{_lambda_.4} parent=0 // pred_check_branch
    %18 = sbr.rel (0) target = $region17
  $region16: #{_lambda_.4} parent=0 // pred_region
    _
  $region17: #{_lambda_.4} parent=0 // pred_fallthru
    _
  // Predicated region
  $region18: #{_lambda_.4} parent=0 // pred_check
    _
  $region19: #{_lambda_.4} parent=0 // pred_check_branch
    %20 = sbr.rel (0) target = $region21
  $region20: #{_lambda_.4} parent=0 // pred_region
    _
  $region21: #{_lambda_.4} parent=0 // pred_fallthru
    _
  // Predicated region
  $region22: #{_lambda_.4} parent=0 // pred_check
    _
  $region23: #{_lambda_.4} parent=0 // pred_check_branch
    %22 = sbr.rel (0) target = $region25
  $region24: #{_lambda_.4} parent=0 // pred_region
    _
  $region25: #{_lambda_.4} parent=0 // pred_fallthru
    _
  %v24 = vld [vmem:[%s1] sm:$0xf]
  %v25 = vld [vmem:[%s1 + $0x4] sm:$0xf]
  %v26 = vld [vmem:[%s1 + $0x8] sm:$0xf]
  %v27 = vld [vmem:[%s1 + $0xc] sm:$0xf]
  %v28 = vld [vmem:[%s4] sm:$0xff]
  %v29 = vld [vmem:[%s4 + $0x8] sm:$0xff]
  %v30 = vld [vmem:[%s4 + $0x10] sm:$0xff]
  %v31 = vld [vmem:[%s4 + $0x18] sm:$0xff]
  %v32 = vld [vmem:[%s5] sm:$0xff]
  %v33 = vld [vmem:[%s5 + $0x8] sm:$0xff]
  %v34 = vld [vmem:[%s5 + $0x10] sm:$0xff]
  %v35 = vld [vmem:[%s5 + $0x18] sm:$0xff]
  %v36 = vld [vmem:[%s0] sm:$0xff]
  %v37 = vpack.c.bf16 %v36, %v36
  %v42 = vunpack.c.l.b16 %v24
  %v43 = vunpack.c.l.b16 %v25
  %v44 = vunpack.c.l.b16 %v26
  %v45 = vunpack.c.l.b16 %v27
  %v46 = vpack.c.b16 %v43, %v42
  %v47 = vpack.c.b16 %v45, %v44
  %vm48 = vcmask 64512
  %v50 = vsel %vm48, %v46, 0
  %v53 = vsel %vm48, %v47, 0
  %vm55 = vcmask 1043456
  %v57 = vsel %vm55, %v37, 0
  %59 = vmatprep.subr.bf16.mxu0 0
  %60 = vmatpush1.bf16.msra.mxu0 %v57
  %61 = vmatprep.subr.bf16.mxu0 0
  %62 = vmatpush1.bf16.msra.mxu0 0
  %63 = vmatprep.subr.bf16.mxu0 0
  %64 = vmatpush1.bf16.msra.mxu0 0
  %65 = vmatprep.subr.bf16.mxu0 0
  %66 = vmatpush1.bf16.msra.mxu0 0
  %67 = vmatprep.subr.bf16.mxu0 0
  %68 = vmatpush1.bf16.msra.mxu0 0
  %69 = vmatprep.subr.bf16.mxu0 0
  %70 = vmatpush1.bf16.msra.mxu0 0
  %71 = vmatprep.subr.bf16.mxu0 0
  %72 = vmatpush1.bf16.msra.mxu0 0
  %73 = vmatprep.subr.bf16.mxu0 0
  %74 = vmatpush1.bf16.msra.mxu0 0
  %75 = vmatprep.subr.bf16.mxu0 0
  %76 = vmatpush1.bf16.msra.mxu0 0
  %77 = vmatprep.subr.bf16.mxu0 0
  %78 = vmatpush1.bf16.msra.mxu0 0
  %79 = vmatprep.subr.bf16.mxu0 0
  %80 = vmatpush1.bf16.msra.mxu0 0
  %81 = vmatprep.subr.bf16.mxu0 0
  %82 = vmatpush1.bf16.msra.mxu0 0
  %83 = vmatprep.subr.bf16.mxu0 0
  %84 = vmatpush1.bf16.msra.mxu0 0
  %85 = vmatprep.subr.bf16.mxu0 0
  %86 = vmatpush1.bf16.msra.mxu0 0
  %87 = vmatprep.subr.bf16.mxu0 0
  %88 = vmatpush1.bf16.msra.mxu0 0
  %89 = vmatprep.subr.bf16.mxu0 0
  %90 = vmatpush1.bf16.msra.mxu0 0
  %91 = vmatprep.mubr.bf16.mxu0 0
  %92 = vmatmul.mubr.bf16.gmra.mrb[0].mxu0 %v50
  %v93 = vpop.f32.mrb[0].mxu0
  %v94 = vadd.f32 0.0, %v93
  %v95 = vpop.f32.mrb[0].mxu0
  %v96 = vpop.f32.mrb[0].mxu0
  %v97 = vadd.f32 0.0, %v96
  %v98 = vpop.f32.mrb[0].mxu0
  %99 = vmatprep.mubr.bf16.mxu0 0
  %100 = vmatmul.mubr.bf16.gmra.mrb[0].mxu0 %v53
  %v101 = vpop.f32.mrb[0].mxu0
  %v102 = vadd.f32 0.0, %v101
  %v103 = vpop.f32.mrb[0].mxu0
  %v104 = vpop.f32.mrb[0].mxu0
  %v105 = vadd.f32 0.0, %v104
  %v106 = vpop.f32.mrb[0].mxu0
  %107 = vdwg.mxu0
  %v108 = vmul.f32 %v94, %v28
  %v109 = vmul.f32 %v97, %v29
  %v110 = vmul.f32 %v102, %v30
  %v111 = vmul.f32 %v105, %v31
  %112 = vadd.xlane.f32.xlu0 %v108
  %v113 = vpop.xlane.xlu0 %112
  %114 = vadd.xlane.f32.xlu0 %v109
  %v115 = vpop.xlane.xlu0 %114
  %116 = vadd.xlane.f32.xlu0 %v110
  %v117 = vpop.xlane.xlu0 %116
  %118 = vadd.xlane.f32.xlu0 %v111
  %v119 = vpop.xlane.xlu0 %118
  %v120 = vadd.f32 %v113, 0.0
  %v121 = vadd.f32 %v115, 0.0
  %v122 = vadd.f32 %v117, 0.0
  %v123 = vadd.f32 %v119, 0.0
  %v124 = vld [vmem:[%s0 + $0x8] sm:$0xff]
  %v125 = vpack.c.bf16 %v124, %v124
  %v127 = vsel %vm55, %v125, 0
  %129 = vmatprep.subr.bf16.mxu0 0
  %130 = vmatpush1.bf16.msra.mxu0 %v127
  %131 = vmatprep.subr.bf16.mxu0 0
  %132 = vmatpush1.bf16.msra.mxu0 0
  %133 = vmatprep.subr.bf16.mxu0 0
  %134 = vmatpush1.bf16.msra.mxu0 0
  %135 = vmatprep.subr.bf16.mxu0 0
  %136 = vmatpush1.bf16.msra.mxu0 0
  %137 = vmatprep.subr.bf16.mxu0 0
  %138 = vmatpush1.bf16.msra.mxu0 0
  %139 = vmatprep.subr.bf16.mxu0 0
  %140 = vmatpush1.bf16.msra.mxu0 0
  %141 = vmatprep.subr.bf16.mxu0 0
  %142 = vmatpush1.bf16.msra.mxu0 0
  %143 = vmatprep.subr.bf16.mxu0 0
  %144 = vmatpush1.bf16.msra.mxu0 0
  %145 = vmatprep.subr.bf16.mxu0 0
  %146 = vmatpush1.bf16.msra.mxu0 0
  %147 = vmatprep.subr.bf16.mxu0 0
  %148 = vmatpush1.bf16.msra.mxu0 0
  %149 = vmatprep.subr.bf16.mxu0 0
  %150 = vmatpush1.bf16.msra.mxu0 0
  %151 = vmatprep.subr.bf16.mxu0 0
  %152 = vmatpush1.bf16.msra.mxu0 0
  %153 = vmatprep.subr.bf16.mxu0 0
  %154 = vmatpush1.bf16.msra.mxu0 0
  %155 = vmatprep.subr.bf16.mxu0 0
  %156 = vmatpush1.bf16.msra.mxu0 0
  %157 = vmatprep.subr.bf16.mxu0 0
  %158 = vmatpush1.bf16.msra.mxu0 0
  %159 = vmatprep.subr.bf16.mxu0 0
  %160 = vmatpush1.bf16.msra.mxu0 0
  %161 = vmatprep.mubr.bf16.mxu0 0
  %162 = vmatmul.mubr.bf16.gmra.mrb[0].mxu0 %v50
  %v163 = vpop.f32.mrb[0].mxu0
  %v164 = vadd.f32 0.0, %v163
  %v165 = vpop.f32.mrb[0].mxu0
  %v166 = vpop.f32.mrb[0].mxu0
  %v167 = vadd.f32 0.0, %v166
  %v168 = vpop.f32.mrb[0].mxu0
  %169 = vmatprep.mubr.bf16.mxu0 0
  %170 = vmatmul.mubr.bf16.gmra.mrb[0].mxu0 %v53
  %v171 = vpop.f32.mrb[0].mxu0
  %v172 = vadd.f32 0.0, %v171
  %v173 = vpop.f32.mrb[0].mxu0
  %v174 = vpop.f32.mrb[0].mxu0
  %v175 = vadd.f32 0.0, %v174
  %v176 = vpop.f32.mrb[0].mxu0
  %177 = vdwg.mxu0
  %v178 = vmul.f32 %v164, %v28
  %v179 = vmul.f32 %v167, %v29
  %v180 = vmul.f32 %v172, %v30
  %v181 = vmul.f32 %v175, %v31
  %182 = vadd.xlane.f32.xlu0 %v178
  %v183 = vpop.xlane.xlu0 %182
  %184 = vadd.xlane.f32.xlu0 %v179
  %v185 = vpop.xlane.xlu0 %184
  %186 = vadd.xlane.f32.xlu0 %v180
  %v187 = vpop.xlane.xlu0 %186
  %188 = vadd.xlane.f32.xlu0 %v181
  %v189 = vpop.xlane.xlu0 %188
  %v190 = vadd.f32 %v120, %v183
  %v191 = vadd.f32 %v121, %v185
  %v192 = vadd.f32 %v122, %v187
  %v193 = vadd.f32 %v123, %v189
  %v194 = vmul.f32 %v190, %v32
  %v195 = vmul.f32 %v191, %v33
  %v196 = vmul.f32 %v192, %v34
  %v197 = vmul.f32 %v193, %v35
  %199 = vset.pattern.permute.xlu0 0
  %200 = vperm.xlu0 %199, %v194
  %v201 = vpop.permute.xlu0 %200
  %204 = vset.pattern.permute.xlu0 0
  %205 = vperm.xlu0 %204, %v195
  %v206 = vpop.permute.xlu0 %205
  %209 = vset.pattern.permute.xlu0 0
  %210 = vperm.xlu0 %209, %v196
  %v211 = vpop.permute.xlu0 %210
  %214 = vset.pattern.permute.xlu0 0
  %215 = vperm.xlu0 %214, %v197
  %v216 = vpop.permute.xlu0 %215
  %v218 = vsub.f32 %v94, %v201
  %v219 = vsub.f32 %v97, %v206
  %v220 = vsub.f32 %v102, %v211
  %v221 = vsub.f32 %v105, %v216
  %v222 = vmul.f32 %v218, %v28
  %v223 = vmul.f32 %v219, %v29
  %v224 = vmul.f32 %v220, %v30
  %v225 = vmul.f32 %v221, %v31
  %v226 = vmul.f32 %v222, %v222
  %v227 = vmul.f32 %v223, %v223
  %v228 = vmul.f32 %v224, %v224
  %v229 = vmul.f32 %v225, %v225
  %230 = vadd.xlane.f32.xlu0 %v226
  %v231 = vpop.xlane.xlu0 %230
  %232 = vadd.xlane.f32.xlu0 %v227
  %v233 = vpop.xlane.xlu0 %232
  %234 = vadd.xlane.f32.xlu0 %v228
  %v235 = vpop.xlane.xlu0 %234
  %236 = vadd.xlane.f32.xlu0 %v229
  %v237 = vpop.xlane.xlu0 %236
  %v238 = vadd.f32 %v231, 0.0
  %v239 = vadd.f32 %v233, 0.0
  %v240 = vadd.f32 %v235, 0.0
  %v241 = vadd.f32 %v237, 0.0
  %v242 = vsub.f32 %v164, %v201
  %v243 = vsub.f32 %v167, %v206
  %v244 = vsub.f32 %v172, %v211
  %v245 = vsub.f32 %v175, %v216
  %v246 = vmul.f32 %v242, %v28
  %v247 = vmul.f32 %v243, %v29
  %v248 = vmul.f32 %v244, %v30
  %v249 = vmul.f32 %v245, %v31
  %v250 = vmul.f32 %v246, %v246
  %v251 = vmul.f32 %v247, %v247
  %v252 = vmul.f32 %v248, %v248
  %v253 = vmul.f32 %v249, %v249
  %254 = vadd.xlane.f32.xlu0 %v250
  %v255 = vpop.xlane.xlu0 %254
  %256 = vadd.xlane.f32.xlu0 %v251
  %v257 = vpop.xlane.xlu0 %256
  %258 = vadd.xlane.f32.xlu0 %v252
  %v259 = vpop.xlane.xlu0 %258
  %260 = vadd.xlane.f32.xlu0 %v253
  %v261 = vpop.xlane.xlu0 %260
  %v262 = vadd.f32 %v238, %v255
  %v263 = vadd.f32 %v239, %v257
  %v264 = vadd.f32 %v240, %v259
  %v265 = vadd.f32 %v241, %v261
  %v266 = vmul.f32 %v262, %v32
  %v267 = vmul.f32 %v263, %v33
  %v268 = vmul.f32 %v264, %v34
  %v269 = vmul.f32 %v265, %v35
  %v270 = vld [vmem:[%s2] sm:$0xff]
  %v271 = vld [vmem:[%s2 + $0x8] sm:$0xff]
  %v272 = vld [vmem:[%s2 + $0x10] sm:$0xff]
  %v273 = vld [vmem:[%s2 + $0x18] sm:$0xff]
  %v274 = vadd.f32 %v266, 1e-05
  %v275 = vadd.f32 %v267, 1e-05
  %v276 = vadd.f32 %v268, 1e-05
  %v277 = vadd.f32 %v269, 1e-05
  %v278 = vrsqrt.pop %v274
  %v279 = vrsqrt.pop %v275
  %v280 = vrsqrt.pop %v276
  %v281 = vrsqrt.pop %v277
  %v282 = vmul.f32 %v270, %v278
  %v283 = vmul.f32 %v271, %v279
  %v284 = vmul.f32 %v272, %v280
  %v285 = vmul.f32 %v273, %v281
  %v286 = vld [vmem:[%s3] sm:$0xff]
  %v287 = vld [vmem:[%s3 + $0x8] sm:$0xff]
  %v288 = vld [vmem:[%s3 + $0x10] sm:$0xff]
  %v289 = vld [vmem:[%s3 + $0x18] sm:$0xff]
  %v290 = vmul.f32 %v194, %v282
  %v291 = vmul.f32 %v195, %v283
  %v292 = vmul.f32 %v196, %v284
  %v293 = vmul.f32 %v197, %v285
  %v294 = vsub.f32 %v286, %v290
  %v295 = vsub.f32 %v287, %v291
  %v296 = vsub.f32 %v288, %v292
  %v297 = vsub.f32 %v289, %v293
  %299 = vset.pattern.permute.xlu0 0
  %300 = vperm.xlu0 %299, %v282
  %v301 = vpop.permute.xlu0 %300
  %304 = vset.pattern.permute.xlu0 0
  %305 = vperm.xlu0 %304, %v283
  %v306 = vpop.permute.xlu0 %305
  %309 = vset.pattern.permute.xlu0 0
  %310 = vperm.xlu0 %309, %v284
  %v311 = vpop.permute.xlu0 %310
  %314 = vset.pattern.permute.xlu0 0
  %315 = vperm.xlu0 %314, %v285
  %v316 = vpop.permute.xlu0 %315
  %v318 = vmul.f32 %v94, %v301
  %v319 = vmul.f32 %v97, %v306
  %v320 = vmul.f32 %v102, %v311
  %v321 = vmul.f32 %v105, %v316
  %323 = vset.pattern.permute.xlu0 0
  %324 = vperm.xlu0 %323, %v294
  %v325 = vpop.permute.xlu0 %324
  %328 = vset.pattern.permute.xlu0 0
  %329 = vperm.xlu0 %328, %v295
  %v330 = vpop.permute.xlu0 %329
  %333 = vset.pattern.permute.xlu0 0
  %334 = vperm.xlu0 %333, %v296
  %v335 = vpop.permute.xlu0 %334
  %338 = vset.pattern.permute.xlu0 0
  %339 = vperm.xlu0 %338, %v297
  %v340 = vpop.permute.xlu0 %339
  %v342 = vadd.f32 %v318, %v325
  %v343 = vadd.f32 %v319, %v330
  %v344 = vadd.f32 %v320, %v335
  %v345 = vadd.f32 %v321, %v340
  %v346 = vmax.f32 %v342, 0.0
  %v347 = vmax.f32 %v343, 0.0
  %v348 = vmax.f32 %v344, 0.0
  %v349 = vmax.f32 %v345, 0.0
  %v350 = vmul.f32 %v346, %v28
  %v351 = vmul.f32 %v347, %v29
  %v352 = vmul.f32 %v348, %v30
  %v353 = vmul.f32 %v349, %v31
  %v354 = vpack.c.bf16 %v351, %v350
  %v355 = vpack.c.bf16 %v353, %v352
  %v358 = vunpack.c.l.b16 %v354
  %v359 = vunpack.c.h.b16 %v354
  %v360 = vunpack.c.l.b16 %v355
  %v361 = vunpack.c.h.b16 %v355
  %v362 = vpack.c.b16 %v358, %v358
  %v363 = vpack.c.b16 %v359, %v359
  %v364 = vpack.c.b16 %v360, %v360
  %v365 = vpack.c.b16 %v361, %v361
  %370 = vst [vmem:[%s6] sm:$0xf] %v362
  %371 = vst [vmem:[%s6 + $0x4] sm:$0xf] %v363
  %372 = vst [vmem:[%s6 + $0x8] sm:$0xf] %v364
  %373 = vst [vmem:[%s6 + $0xc] sm:$0xf] %v365
  %v374 = vmul.f32 %v164, %v301
  %v375 = vmul.f32 %v167, %v306
  %v376 = vmul.f32 %v172, %v311
  %v377 = vmul.f32 %v175, %v316
  %v378 = vadd.f32 %v374, %v325
  %v379 = vadd.f32 %v375, %v330
  %v380 = vadd.f32 %v376, %v335
  %v381 = vadd.f32 %v377, %v340
  %v382 = vmax.f32 %v378, 0.0
  %v383 = vmax.f32 %v379, 0.0
  %v384 = vmax.f32 %v380, 0.0
  %v385 = vmax.f32 %v381, 0.0
  %v386 = vmul.f32 %v382, %v28
  %v387 = vmul.f32 %v383, %v29
  %v388 = vmul.f32 %v384, %v30
  %v389 = vmul.f32 %v385, %v31
  %v390 = vpack.c.bf16 %v387, %v386
  %v391 = vpack.c.bf16 %v389, %v388
  %v394 = vunpack.c.l.b16 %v390
  %v395 = vunpack.c.h.b16 %v390
  %v396 = vunpack.c.l.b16 %v391
  %v397 = vunpack.c.h.b16 %v391
  %v398 = vpack.c.b16 %v394, %v394
  %v399 = vpack.c.b16 %v395, %v395
  %v400 = vpack.c.b16 %v396, %v396
  %v401 = vpack.c.b16 %v397, %v397
  %s406 = scalar_lea.vmem %s6, 16
  %407 = vst [vmem:[%s406] sm:$0xf] %v398
  %408 = vst [vmem:[%s406 + $0x4] sm:$0xf] %v399
  %409 = vst [vmem:[%s406 + $0x8] sm:$0xf] %v400
  %410 = vst [vmem:[%s406 + $0xc] sm:$0xf] %v401
  // Predicated region
  $region26: #{_lambda_.4} parent=0 // pred_check
    _
  $region27: #{_lambda_.4} parent=0 // pred_check_branch
    %412 = sbr.rel (0) target = $region29
  $region28: #{_lambda_.4} parent=0 // pred_region
    _
  $region29: #{_lambda_.4} parent=0 // pred_fallthru
    _
  // Predicated region
  $region30: #{_lambda_.4} parent=0 // pred_check
    _
  $region31: #{_lambda_.4} parent=0 // pred_check_branch
    %414 = sbr.rel (0) target = $region33
  $region32: #{_lambda_.4} parent=0 // pred_region
    _
  $region33: #{_lambda_.4} parent=0 // pred_fallthru
    _

</llo_original>
